<compile_context>
chip_gen: v7x
topology: tpu7x:2x2x1
jax: 0.10.0
libtpu: 0.0.40
codegen_flags: <defaults>
</compile_context>

<pallas_src>
from functools import partial

import jax
import jax.numpy as jnp
from jax import lax
from jax.experimental import pallas as pl
from jax.experimental.pallas import tpu as pltpu

_HI = lax.Precision.HIGHEST


def _relu(x):
    return jnp.maximum(x, 0.0)


def _mm(w, x):
    # (out, in) @ (in, TB) -> (out, TB), exact f32 on the MXU.
    return jnp.dot(w, x, precision=_HI, preferred_element_type=jnp.float32)


def model_kernel(xt_ref,
                 w1_ref, b1_ref,
                 w2_ref, b2_ref,
                 w25_ref, b25_ref,
                 w3_ref, b3_ref,
                 out_ref):
    xt = xt_ref[...]                                            # (99, TB)

    x1 = _relu(_mm(w1_ref[...], xt) + b1_ref[...])              # (30, TB)
    # NOTE: original module also computes X15 = relu(conv1(X1.unsqueeze(1)))
    # but it never feeds the returned value; the dead branch is omitted.
    x2 = _relu(_mm(w2_ref[...], x1) + b2_ref[...])              # (20, TB)
    x25 = _relu(_mm(w25_ref[...], x2) + b25_ref[...])           # (11, TB)
    logits = _mm(w3_ref[...], x25) + b3_ref[...]                # (5, TB)

    # softmax over the feature (sublane) axis
    m = jnp.max(logits, axis=0, keepdims=True)                  # (1, TB)
    e = jnp.exp(logits - m)
    s = jnp.sum(e, axis=0, keepdims=True)                       # (1, TB)
    out_ref[...] = e * pl.reciprocal(s, approx=False)           # (5, TB)


def _round_up(v, m):
    return (v + m - 1) // m * m


def _choose_batch_tile(B, cap=2048, lane=128):
    """Lane tile for the batch axis: multiple of 128 (or the full dim), and
    >= 2 grid steps for mid/large batches so v7x's two TCs both get work."""
    if B <= 2 * lane:
        return B  # full-dim block is always legal
    n_tiles = max(2, -(-B // cap))
    return min(cap, _round_up(-(-B // n_tiles), lane))


def model_forward(x, params):
    B, F = x.shape
    TB = _choose_batch_tile(B)
    grid = (pl.cdiv(B, TB),)

    xt = x.T  # (99, B): batch on the lane axis

    def resident(arr):
        # Same block every grid step -> weights/biases stay resident in VMEM.
        return pl.BlockSpec(arr.shape, lambda i: (0,) * arr.ndim)

    w1, b1 = params["w1"], params["b1"]
    w2, b2 = params["w2"], params["b2"]
    w25, b25 = params["w25"], params["b25"]
    w3, b3 = params["w3"], params["b3"]

    out_t = pl.pallas_call(
        model_kernel,
        out_shape=jax.ShapeDtypeStruct((5, B), jnp.float32),
        grid_spec=pltpu.PrefetchScalarGridSpec(
            num_scalar_prefetch=0,
            grid=grid,
            in_specs=[
                pl.BlockSpec((F, TB), lambda i: (0, i)),
                resident(w1), resident(b1),
                resident(w2), resident(b2),
                resident(w25), resident(b25),
                resident(w3), resident(b3),
            ],
            out_specs=pl.BlockSpec((5, TB), lambda i: (0, i)),
        ),
        compiler_params=pltpu.CompilerParams(
            dimension_semantics=("parallel",)),
    )(xt, w1, b1, w2, b2, w25, b25, w3, b3)

    return out_t.T  # (B, 5) for the caller; HBM slab is only 20 B/row.


def make_params(key):
    ks = jax.random.split(key, 8)

    def linear(kw, kb, fan_in, fan_out):
        # PyTorch nn.Linear default init: U(-1/sqrt(fan_in), 1/sqrt(fan_in)).
        # Weight kept in PyTorch (out, in) layout; bias as (out, 1).
        bound = 1.0 / jnp.sqrt(fan_in)
        w = jax.random.uniform(kw, (fan_out, fan_in), jnp.float32, -bound, bound)
        b = jax.random.uniform(kb, (fan_out, 1), jnp.float32, -bound, bound)
        return w, b

    w1, b1 = linear(ks[0], ks[1], 99, 30)
    w2, b2 = linear(ks[2], ks[3], 30, 20)
    w25, b25 = linear(ks[4], ks[5], 20, 11)
    w3, b3 = linear(ks[6], ks[7], 11, 5)
    return dict(w1=w1, b1=b1, w2=w2, b2=b2, w25=w25, b25=b25, w3=w3, b3=b3)


def _linear_ref(x, w, b):
    return jnp.dot(x, w.T, precision=_HI) + b[:, 0]


def reference_forward(x, p):
    x1 = jnp.maximum(_linear_ref(x, p["w1"], p["b1"]), 0.0)
    x2 = jnp.maximum(_linear_ref(x1, p["w2"], p["b2"]), 0.0)
    x25 = jnp.maximum(_linear_ref(x2, p["w25"], p["b25"]), 0.0)
    return jax.nn.softmax(_linear_ref(x25, p["w3"], p["b3"]), axis=-1)


if __name__ == "__main__":
    key = jax.random.PRNGKey(0)
    kx, kp = jax.random.split(key)
    B = 8
    x = jax.random.normal(kx, (B, 99), jnp.float32)
    params = make_params(kp)

    out = jax.block_until_ready(model_forward(x, params))
    ref = reference_forward(x, params)

    assert out.shape == (B, 5)
    assert jnp.allclose(out, ref, atol=1e-5, rtol=1e-5)
    assert jnp.allclose(jnp.sum(out, axis=-1), 1.0, atol=1e-5)
    print("KERNEL_OK")
</pallas_src>

<mosaic_0001>
module attributes {stable_mosaic.version = 11 : i64} {
  func.func @model_kernel(%arg0: i32, %arg1: memref<99x8xf32, #tpu.memory_space<vmem>>, %arg2: memref<30x99xf32, #tpu.memory_space<vmem>>, %arg3: memref<30x1xf32, #tpu.memory_space<vmem>>, %arg4: memref<20x30xf32, #tpu.memory_space<vmem>>, %arg5: memref<20x1xf32, #tpu.memory_space<vmem>>, %arg6: memref<11x20xf32, #tpu.memory_space<vmem>>, %arg7: memref<11x1xf32, #tpu.memory_space<vmem>>, %arg8: memref<5x11xf32, #tpu.memory_space<vmem>>, %arg9: memref<5x1xf32, #tpu.memory_space<vmem>>, %arg10: memref<5x8xf32, #tpu.memory_space<vmem>>) attributes {dimension_semantics = [#tpu.dimension_semantics<parallel>], iteration_bounds = array<i64: 1>, scalar_prefetch = 0 : i64, scratch_operands = 0 : i64, tpu.core_type = #tpu.core_type<tc>, window_params = [{transform_indices = @transform_0, window_bounds = array<i64: 99, 8>}, {pipeline_mode = #tpu.pipeline_mode<synchronous>, transform_indices = @transform_1, window_bounds = array<i64: 30, 99>}, {pipeline_mode = #tpu.pipeline_mode<synchronous>, transform_indices = @transform_2, window_bounds = array<i64: 30, 1>}, {pipeline_mode = #tpu.pipeline_mode<synchronous>, transform_indices = @transform_3, window_bounds = array<i64: 20, 30>}, {pipeline_mode = #tpu.pipeline_mode<synchronous>, transform_indices = @transform_4, window_bounds = array<i64: 20, 1>}, {pipeline_mode = #tpu.pipeline_mode<synchronous>, transform_indices = @transform_5, window_bounds = array<i64: 11, 20>}, {pipeline_mode = #tpu.pipeline_mode<synchronous>, transform_indices = @transform_6, window_bounds = array<i64: 11, 1>}, {pipeline_mode = #tpu.pipeline_mode<synchronous>, transform_indices = @transform_7, window_bounds = array<i64: 5, 11>}, {pipeline_mode = #tpu.pipeline_mode<synchronous>, transform_indices = @transform_8, window_bounds = array<i64: 5, 1>}, {transform_indices = @transform_9, window_bounds = array<i64: 5, 8>}]} {
    %c0 = arith.constant 0 : index
    %c0_0 = arith.constant 0 : index
    %0 = vector.load %arg1[%c0, %c0_0] : memref<99x8xf32, #tpu.memory_space<vmem>>, vector<99x8xf32>
    %c0_1 = arith.constant 0 : index
    %c0_2 = arith.constant 0 : index
    %1 = vector.load %arg2[%c0_1, %c0_2] : memref<30x99xf32, #tpu.memory_space<vmem>>, vector<30x99xf32>
    %cst = arith.constant dense<0.000000e+00> : vector<30x8xf32>
    %2 = tpu.matmul %1, %0, %cst {dimension_numbers = #tpu.dot_dimension_numbers<[1], [0], [0], [1], [0, 0, 1, 1], [], []>, precision = #tpu.contract_precision<fp32>} : vector<30x99xf32>, vector<99x8xf32>, vector<30x8xf32> -> vector<30x8xf32>
    %c0_3 = arith.constant 0 : index
    %c0_4 = arith.constant 0 : index
    %3 = vector.load %arg3[%c0_3, %c0_4] : memref<30x1xf32, #tpu.memory_space<vmem>>, vector<30x1xf32>
    %4 = vector.broadcast %3 : vector<30x1xf32> to vector<30x8xf32>
    %5 = arith.addf %2, %4 : vector<30x8xf32>
    %cst_5 = arith.constant 0.000000e+00 : f32
    %6 = vector.broadcast %cst_5 : f32 to vector<30x8xf32>
    %7 = arith.maximumf %5, %6 : vector<30x8xf32>
    %c0_6 = arith.constant 0 : index
    %c0_7 = arith.constant 0 : index
    %8 = vector.load %arg4[%c0_6, %c0_7] : memref<20x30xf32, #tpu.memory_space<vmem>>, vector<20x30xf32>
    %cst_8 = arith.constant dense<0.000000e+00> : vector<20x8xf32>
    %9 = tpu.matmul %8, %7, %cst_8 {dimension_numbers = #tpu.dot_dimension_numbers<[1], [0], [0], [1], [0, 0, 1, 1], [], []>, precision = #tpu.contract_precision<fp32>} : vector<20x30xf32>, vector<30x8xf32>, vector<20x8xf32> -> vector<20x8xf32>
    %c0_9 = arith.constant 0 : index
    %c0_10 = arith.constant 0 : index
    %10 = vector.load %arg5[%c0_9, %c0_10] : memref<20x1xf32, #tpu.memory_space<vmem>>, vector<20x1xf32>
    %11 = vector.broadcast %10 : vector<20x1xf32> to vector<20x8xf32>
    %12 = arith.addf %9, %11 : vector<20x8xf32>
    %cst_11 = arith.constant 0.000000e+00 : f32
    %13 = vector.broadcast %cst_11 : f32 to vector<20x8xf32>
    %14 = arith.maximumf %12, %13 : vector<20x8xf32>
    %c0_12 = arith.constant 0 : index
    %c0_13 = arith.constant 0 : index
    %15 = vector.load %arg6[%c0_12, %c0_13] : memref<11x20xf32, #tpu.memory_space<vmem>>, vector<11x20xf32>
    %cst_14 = arith.constant dense<0.000000e+00> : vector<11x8xf32>
    %16 = tpu.matmul %15, %14, %cst_14 {dimension_numbers = #tpu.dot_dimension_numbers<[1], [0], [0], [1], [0, 0, 1, 1], [], []>, precision = #tpu.contract_precision<fp32>} : vector<11x20xf32>, vector<20x8xf32>, vector<11x8xf32> -> vector<11x8xf32>
    %c0_15 = arith.constant 0 : index
    %c0_16 = arith.constant 0 : index
    %17 = vector.load %arg7[%c0_15, %c0_16] : memref<11x1xf32, #tpu.memory_space<vmem>>, vector<11x1xf32>
    %18 = vector.broadcast %17 : vector<11x1xf32> to vector<11x8xf32>
    %19 = arith.addf %16, %18 : vector<11x8xf32>
    %cst_17 = arith.constant 0.000000e+00 : f32
    %20 = vector.broadcast %cst_17 : f32 to vector<11x8xf32>
    %21 = arith.maximumf %19, %20 : vector<11x8xf32>
    %c0_18 = arith.constant 0 : index
    %c0_19 = arith.constant 0 : index
    %22 = vector.load %arg8[%c0_18, %c0_19] : memref<5x11xf32, #tpu.memory_space<vmem>>, vector<5x11xf32>
    %cst_20 = arith.constant dense<0.000000e+00> : vector<5x8xf32>
    %23 = tpu.matmul %22, %21, %cst_20 {dimension_numbers = #tpu.dot_dimension_numbers<[1], [0], [0], [1], [0, 0, 1, 1], [], []>, precision = #tpu.contract_precision<fp32>} : vector<5x11xf32>, vector<11x8xf32>, vector<5x8xf32> -> vector<5x8xf32>
    %c0_21 = arith.constant 0 : index
    %c0_22 = arith.constant 0 : index
    %24 = vector.load %arg9[%c0_21, %c0_22] : memref<5x1xf32, #tpu.memory_space<vmem>>, vector<5x1xf32>
    %25 = vector.broadcast %24 : vector<5x1xf32> to vector<5x8xf32>
    %26 = arith.addf %23, %25 : vector<5x8xf32>
    %cst_23 = arith.constant dense<0xFF800000> : vector<8xf32>
    %27 = vector.multi_reduction <maximumf>, %26, %cst_23 [0] : vector<5x8xf32> to vector<8xf32>
    %28 = vector.shape_cast %27 : vector<8xf32> to vector<1x8xf32>
    %29 = vector.broadcast %28 : vector<1x8xf32> to vector<5x8xf32>
    %30 = arith.subf %26, %29 : vector<5x8xf32>
    %31 = math.exp %30 : vector<5x8xf32>
    %cst_24 = arith.constant dense<0.000000e+00> : vector<8xf32>
    %32 = vector.multi_reduction <add>, %31, %cst_24 [0] : vector<5x8xf32> to vector<8xf32>
    %33 = vector.shape_cast %32 : vector<8xf32> to vector<1x8xf32>
    %34 = tpu.reciprocal %33 : vector<1x8xf32> -> vector<1x8xf32>
    %35 = vector.broadcast %34 : vector<1x8xf32> to vector<5x8xf32>
    %36 = arith.mulf %31, %35 : vector<5x8xf32>
    %c0_25 = arith.constant 0 : index
    %c0_26 = arith.constant 0 : index
    %37 = vector.load %arg10[%c0_25, %c0_26] : memref<5x8xf32, #tpu.memory_space<vmem>>, vector<5x8xf32>
    tpu.vector_store %arg10[%c0_25, %c0_26], %36 {strides = array<i32>} : memref<5x8xf32, #tpu.memory_space<vmem>>, vector<5x8xf32>,
    return
  }
  func.func @transform_0(%arg0: i32) -> (i32, i32) {
    %c0_i32 = arith.constant 0 : i32
    %c0_i32_0 = arith.constant 0 : i32
    return %c0_i32, %arg0 : i32, i32
  }
  func.func @transform_1(%arg0: i32) -> (i32, i32) {
    %c0_i32 = arith.constant 0 : i32
    %c0_i32_0 = arith.constant 0 : i32
    %c0_i32_1 = arith.constant 0 : i32
    return %c0_i32, %c0_i32_0 : i32, i32
  }
  func.func @transform_2(%arg0: i32) -> (i32, i32) {
    %c0_i32 = arith.constant 0 : i32
    %c0_i32_0 = arith.constant 0 : i32
    %c0_i32_1 = arith.constant 0 : i32
    return %c0_i32, %c0_i32_0 : i32, i32
  }
  func.func @transform_3(%arg0: i32) -> (i32, i32) {
    %c0_i32 = arith.constant 0 : i32
    %c0_i32_0 = arith.constant 0 : i32
    %c0_i32_1 = arith.constant 0 : i32
    return %c0_i32, %c0_i32_0 : i32, i32
  }
  func.func @transform_4(%arg0: i32) -> (i32, i32) {
    %c0_i32 = arith.constant 0 : i32
    %c0_i32_0 = arith.constant 0 : i32
    %c0_i32_1 = arith.constant 0 : i32
    return %c0_i32, %c0_i32_0 : i32, i32
  }
  func.func @transform_5(%arg0: i32) -> (i32, i32) {
    %c0_i32 = arith.constant 0 : i32
    %c0_i32_0 = arith.constant 0 : i32
    %c0_i32_1 = arith.constant 0 : i32
    return %c0_i32, %c0_i32_0 : i32, i32
  }
  func.func @transform_6(%arg0: i32) -> (i32, i32) {
    %c0_i32 = arith.constant 0 : i32
    %c0_i32_0 = arith.constant 0 : i32
    %c0_i32_1 = arith.constant 0 : i32
    return %c0_i32, %c0_i32_0 : i32, i32
  }
  func.func @transform_7(%arg0: i32) -> (i32, i32) {
    %c0_i32 = arith.constant 0 : i32
    %c0_i32_0 = arith.constant 0 : i32
    %c0_i32_1 = arith.constant 0 : i32
    return %c0_i32, %c0_i32_0 : i32, i32
  }
  func.func @transform_8(%arg0: i32) -> (i32, i32) {
    %c0_i32 = arith.constant 0 : i32
    %c0_i32_0 = arith.constant 0 : i32
    %c0_i32_1 = arith.constant 0 : i32
    return %c0_i32, %c0_i32_0 : i32, i32
  }
  func.func @transform_9(%arg0: i32) -> (i32, i32) {
    %c0_i32 = arith.constant 0 : i32
    %c0_i32_0 = arith.constant 0 : i32
    return %c0_i32, %arg0 : i32, i32
  }
}

</mosaic_0001>

<llo_original>
// kernel: tpu_custom_call.1
$region0: #{tpu_custom_call.1}
  #allocation0 [shape = 'u32[]', space=smem, size = 0x4, offset = 0x4, fixed_abs, tag = 'smem constant byte address 0x4 - core index']
  #allocation1 [shape = 'u32[144,128]{1,0:T(1,128)}', space=vmem, size = 0x12000, scoped, tag = 'internal scratch']
  %s0 = inlined_call_operand.vmem [shape: f32[99,8], index: 0, kind: input, shape index: {}]
  %s1 = inlined_call_operand.vmem [shape: f32[30,99], index: 1, kind: input, shape index: {}]
  %s2 = inlined_call_operand.vmem [shape: f32[30,1], index: 2, kind: input, shape index: {}]
  %s3 = inlined_call_operand.vmem [shape: f32[20,30], index: 3, kind: input, shape index: {}]
  %s4 = inlined_call_operand.vmem [shape: f32[20,1], index: 4, kind: input, shape index: {}]
  %s5 = inlined_call_operand.vmem [shape: f32[11,20], index: 5, kind: input, shape index: {}]
  %s6 = inlined_call_operand.vmem [shape: f32[11,1], index: 6, kind: input, shape index: {}]
  %s7 = inlined_call_operand.vmem [shape: f32[5,11], index: 7, kind: input, shape index: {}]
  %s8 = inlined_call_operand.vmem [shape: f32[5,1], index: 8, kind: input, shape index: {}]
  %s9 = inlined_call_operand.hbm [shape: f32[5,8], index: 9, kind: output, shape index: {}]
  %s10 = sld [smem:[#allocation0]]
  $region46: #{tpu_custom_call.1} parent=0
    _
  %s12 = ssub.s32 1, %s10
  %s13 = scalar_select 0, %s12, %s10
  $region1: #{tpu_custom_call.1} parent=0
    #allocation2 [shape = 'u8[4096]{0}', space=vmem, size = 0x1000, scoped, tag = 'output window, operand 0, single buffered']
    #allocation3 [shape = 's32[1]{0}', space=sflag, size = 0x4, scoped, tag = 'scoped memory for tpu_custom_call.1']
    %14 = vsyncpa [#allocation3], 0
    // Predicated region
    $region2: #{tpu_custom_call.1} parent=1 // pred_check
      _
    $region3: #{tpu_custom_call.1} parent=1 // pred_check_branch
      %16 = sbr.rel (0) target = $region5
    $region4: #{tpu_custom_call.1} parent=1 // pred_region
      _
    $region5: #{tpu_custom_call.1} parent=1 // pred_fallthru
      _
    // Predicated region
    $region6: #{tpu_custom_call.1} parent=1 // pred_check
      _
    $region7: #{tpu_custom_call.1} parent=1 // pred_check_branch
      %18 = sbr.rel (0) target = $region9
    $region8: #{tpu_custom_call.1} parent=1 // pred_region
      _
    $region9: #{tpu_custom_call.1} parent=1 // pred_fallthru
      _
    // Predicated region
    $region10: #{tpu_custom_call.1} parent=1 // pred_check
      _
    $region11: #{tpu_custom_call.1} parent=1 // pred_check_branch
      %20 = sbr.rel (0) target = $region13
    $region12: #{tpu_custom_call.1} parent=1 // pred_region
      _
    $region13: #{tpu_custom_call.1} parent=1 // pred_fallthru
      _
    // Predicated region
    $region14: #{tpu_custom_call.1} parent=1 // pred_check
      _
    $region15: #{tpu_custom_call.1} parent=1 // pred_check_branch
      %22 = sbr.rel (0) target = $region17
    $region16: #{tpu_custom_call.1} parent=1 // pred_region
      _
    $region17: #{tpu_custom_call.1} parent=1 // pred_fallthru
      _
    // Predicated region
    $region18: #{tpu_custom_call.1} parent=1 // pred_check
      _
    $region19: #{tpu_custom_call.1} parent=1 // pred_check_branch
      %24 = sbr.rel (0) target = $region21
    $region20: #{tpu_custom_call.1} parent=1 // pred_region
      _
    $region21: #{tpu_custom_call.1} parent=1 // pred_fallthru
      _
    // Predicated region
    $region22: #{tpu_custom_call.1} parent=1 // pred_check
      _
    $region23: #{tpu_custom_call.1} parent=1 // pred_check_branch
      %26 = sbr.rel (0) target = $region25
    $region24: #{tpu_custom_call.1} parent=1 // pred_region
      _
    $region25: #{tpu_custom_call.1} parent=1 // pred_fallthru
      _
    // Predicated region
    $region26: #{tpu_custom_call.1} parent=1 // pred_check
      _
    $region27: #{tpu_custom_call.1} parent=1 // pred_check_branch
      %28 = sbr.rel (0) target = $region29
    $region28: #{tpu_custom_call.1} parent=1 // pred_region
      _
    $region29: #{tpu_custom_call.1} parent=1 // pred_fallthru
      _
    // Predicated region
    $region30: #{tpu_custom_call.1} parent=1 // pred_check
      _
    $region31: #{tpu_custom_call.1} parent=1 // pred_check_branch
      %30 = sbr.rel (0) target = $region33
    $region32: #{tpu_custom_call.1} parent=1 // pred_region
      _
    $region33: #{tpu_custom_call.1} parent=1 // pred_fallthru
      _
    // Predicated region
    $region34: #{tpu_custom_call.1} parent=1 // pred_check
      _
    $region35: #{tpu_custom_call.1} parent=1 // pred_check_branch
      %32 = sbr.rel (0) target = $region37
    $region36: #{tpu_custom_call.1} parent=1 // pred_region
      _
    $region37: #{tpu_custom_call.1} parent=1 // pred_fallthru
      _
    %v33 = vld [vmem:[%s0] sm:$0xff]
    %v34 = vld [vmem:[%s0 + $0x8] sm:$0xff]
    %v35 = vld [vmem:[%s0 + $0x10] sm:$0xff]
    %v36 = vld [vmem:[%s0 + $0x18] sm:$0xff]
    %v37 = vld [vmem:[%s0 + $0x20] sm:$0xff]
    %v38 = vld [vmem:[%s0 + $0x28] sm:$0xff]
    %v39 = vld [vmem:[%s0 + $0x30] sm:$0xff]
    %v40 = vld [vmem:[%s0 + $0x38] sm:$0xff]
    %v41 = vld [vmem:[%s0 + $0x40] sm:$0xff]
    %v42 = vld [vmem:[%s0 + $0x48] sm:$0xff]
    %v43 = vld [vmem:[%s0 + $0x50] sm:$0xff]
    %v44 = vld [vmem:[%s0 + $0x58] sm:$0xff]
    %v45 = vld [vmem:[%s0 + $0x60] sm:$0x7]
    %v46 = vld [vmem:[%s1] sm:$0xff]
    %v47 = vld [vmem:[%s1 + $0x8] sm:$0xff]
    %v48 = vld [vmem:[%s1 + $0x10] sm:$0xff]
    %v49 = vld [vmem:[%s1 + $0x18] sm:$0x3f]
    %v50 = vld [vmem:[%s2] sm:$0xff]
    %v51 = vld [vmem:[%s2 + $0x8] sm:$0xff]
    %v52 = vld [vmem:[%s2 + $0x10] sm:$0xff]
    %v53 = vld [vmem:[%s2 + $0x18] sm:$0x3f]
    %55 = vset.pattern.permute.xlu0 0
    %56 = vperm.xlu0 %55, %v50
    %v57 = vpop.permute.xlu0 %56
    %60 = vset.pattern.permute.xlu0 0
    %61 = vperm.xlu0 %60, %v51
    %v62 = vpop.permute.xlu0 %61
    %65 = vset.pattern.permute.xlu0 0
    %66 = vperm.xlu0 %65, %v52
    %v67 = vpop.permute.xlu0 %66
    %70 = vset.pattern.permute.xlu0 0
    %71 = vperm.xlu0 %70, %v53
    %v72 = vpop.permute.xlu0 %71
    %vm74 = vcmask 809984
    %v76 = vsel %vm74, %v46, 0
    %v79 = vsel %vm74, %v47, 0
    %v82 = vsel %vm74, %v48, 0
    %v85 = vsel %vm74, %v49, 0
    %vm87 = vcmask 1042432
    %v89 = vsel %vm87, %v45, 0
    %91 = vmatprep.subr.mxu0 0.0
    %v92 = vand.u32 %v33, 4294901760
    %93 = vmatpush1.msra.mxu0 %v92
    %94 = vmatprep.subr.mxu0 0.0
    %v95 = vand.u32 %v34, 4294901760
    %96 = vmatpush1.msra.mxu0 %v95
    %97 = vmatprep.subr.mxu0 0.0
    %v98 = vand.u32 %v35, 4294901760
    %99 = vmatpush1.msra.mxu0 %v98
    %100 = vmatprep.subr.mxu0 0.0
    %v101 = vand.u32 %v36, 4294901760
    %102 = vmatpush1.msra.mxu0 %v101
    %103 = vmatprep.subr.mxu0 0.0
    %v104 = vand.u32 %v37, 4294901760
    %105 = vmatpush1.msra.mxu0 %v104
    %106 = vmatprep.subr.mxu0 0.0
    %v107 = vand.u32 %v38, 4294901760
    %108 = vmatpush1.msra.mxu0 %v107
    %109 = vmatprep.subr.mxu0 0.0
    %v110 = vand.u32 %v39, 4294901760
    %111 = vmatpush1.msra.mxu0 %v110
    %112 = vmatprep.subr.mxu0 0.0
    %v113 = vand.u32 %v40, 4294901760
    %114 = vmatpush1.msra.mxu0 %v113
    %115 = vmatprep.subr.mxu0 0.0
    %v116 = vand.u32 %v41, 4294901760
    %117 = vmatpush1.msra.mxu0 %v116
    %118 = vmatprep.subr.mxu0 0.0
    %v119 = vand.u32 %v42, 4294901760
    %120 = vmatpush1.msra.mxu0 %v119
    %121 = vmatprep.subr.mxu0 0.0
    %v122 = vand.u32 %v43, 4294901760
    %123 = vmatpush1.msra.mxu0 %v122
    %124 = vmatprep.subr.mxu0 0.0
    %v125 = vand.u32 %v44, 4294901760
    %126 = vmatpush1.msra.mxu0 %v125
    %127 = vmatprep.subr.mxu0 0.0
    %v128 = vand.u32 %v89, 4294901760
    %129 = vmatpush1.msra.mxu0 %v128
    %130 = vmatprep.subr.mxu0 0.0
    %131 = vmatpush1.msra.mxu0 0.0
    %132 = vmatprep.subr.mxu0 0.0
    %133 = vmatpush1.msra.mxu0 0.0
    %134 = vmatprep.subr.mxu0 0.0
    %135 = vmatpush1.msra.mxu0 0.0
    %136 = vmatprep.subr.mxu0 0.0
    %137 = vmatpush1.msra.mxu0 0.0
    %138 = vmatprep.subr.mxu0 0.0
    %139 = vmatpush1.msra.mxu0 0.0
    %140 = vmatprep.subr.mxu0 0.0
    %141 = vmatpush1.msra.mxu0 0.0
    %142 = vmatprep.subr.mxu0 0.0
    %143 = vmatpush1.msra.mxu0 0.0
    %144 = vmatprep.subr.mxu0 0.0
    %145 = vmatpush1.msra.mxu0 0.0
    %146 = vmatprep.subr.mxu0 0.0
    %147 = vmatpush1.msra.mxu0 0.0
    %148 = vmatprep.subr.mxu0 0.0
    %149 = vmatpush1.msra.mxu0 0.0
    %150 = vmatprep.subr.mxu0 0.0
    %151 = vmatpush1.msra.mxu0 0.0
    %152 = vmatprep.subr.mxu0 0.0
    %153 = vmatpush1.msra.mxu0 0.0
    %154 = vmatprep.subr.mxu0 0.0
    %155 = vmatpush1.msra.mxu0 0.0
    %156 = vmatprep.subr.mxu0 0.0
    %157 = vmatpush1.msra.mxu0 0.0
    %158 = vmatprep.subr.mxu0 0.0
    %159 = vmatpush1.msra.mxu0 0.0
    %160 = vmatprep.subr.mxu0 0.0
    %161 = vmatpush1.msra.mxu0 0.0
    %162 = vmatprep.subr.mxu0 0.0
    %163 = vmatpush1.msra.mxu0 0.0
    %164 = vmatprep.subr.mxu0 0.0
    %165 = vmatpush1.msra.mxu0 0.0
    %166 = vmatprep.subr.mxu0 0.0
    %167 = vmatpush1.msra.mxu0 0.0
    %168 = vmatprep.mubr.f32.mxu0 0.0
    %v169 = vand.u32 %v76, 4294901760
    %v170 = vsub.f32 %v76, %v169
    %v171 = vand.u32 %v170, 4294901760
    %v172 = vsub.f32 %v170, %v171
    %v173 = vand.u32 %v172, 4294901760
    %174 = vmatmul.mubr.f32.gmra.mrb[0].mxu0 %v173
    %v175 = vpop.f32.mrb[0].mxu0
    %v176 = vadd.f32 %v57, %v175
    %v177 = vpop.f32.mrb[0].mxu0
    %178 = vmatprep.mubr.f32.mxu0 0.0
    %v179 = vand.u32 %v79, 4294901760
    %v180 = vsub.f32 %v79, %v179
    %v181 = vand.u32 %v180, 4294901760
    %v182 = vsub.f32 %v180, %v181
    %v183 = vand.u32 %v182, 4294901760
    %184 = vmatmul.mubr.f32.gmra.mrb[0].mxu0 %v183
    %v185 = vpop.f32.mrb[0].mxu0
    %v186 = vadd.f32 %v62, %v185
    %v187 = vpop.f32.mrb[0].mxu0
    %188 = vmatprep.mubr.f32.mxu0 0.0
    %v189 = vand.u32 %v82, 4294901760
    %v190 = vsub.f32 %v82, %v189
    %v191 = vand.u32 %v190, 4294901760
    %v192 = vsub.f32 %v190, %v191
    %v193 = vand.u32 %v192, 4294901760
    %194 = vmatmul.mubr.f32.gmra.mrb[0].mxu0 %v193
    %v195 = vpop.f32.mrb[0].mxu0
    %v196 = vadd.f32 %v67, %v195
    %v197 = vpop.f32.mrb[0].mxu0
    %198 = vmatprep.mubr.f32.mxu0 0.0
    %v199 = vand.u32 %v85, 4294901760
    %v200 = vsub.f32 %v85, %v199
    %v201 = vand.u32 %v200, 4294901760
    %v202 = vsub.f32 %v200, %v201
    %v203 = vand.u32 %v202, 4294901760
    %204 = vmatmul.mubr.f32.gmra.mrb[0].mxu0 %v203
    %v205 = vpop.f32.mrb[0].mxu0
    %v206 = vadd.f32 %v72, %v205
    %v207 = vpop.f32.mrb[0].mxu0
    %208 = vdwg.mxu0
    %209 = vmatprep.subr.mxu0 0.0
    %v210 = vand.u32 %v33, 4294901760
    %v211 = vsub.f32 %v33, %v210
    %v212 = vand.u32 %v211, 4294901760
    %v213 = vsub.f32 %v211, %v212
    %v214 = vand.u32 %v213, 4294901760
    %215 = vmatpush1.msra.mxu0 %v214
    %216 = vmatprep.subr.mxu0 0.0
    %v217 = vand.u32 %v34, 4294901760
    %v218 = vsub.f32 %v34, %v217
    %v219 = vand.u32 %v218, 4294901760
    %v220 = vsub.f32 %v218, %v219
    %v221 = vand.u32 %v220, 4294901760
    %222 = vmatpush1.msra.mxu0 %v221
    %223 = vmatprep.subr.mxu0 0.0
    %v224 = vand.u32 %v35, 4294901760
    %v225 = vsub.f32 %v35, %v224
    %v226 = vand.u32 %v225, 4294901760
    %v227 = vsub.f32 %v225, %v226
    %v228 = vand.u32 %v227, 4294901760
    %229 = vmatpush1.msra.mxu0 %v228
    %230 = vmatprep.subr.mxu0 0.0
    %v231 = vand.u32 %v36, 4294901760
    %v232 = vsub.f32 %v36, %v231
    %v233 = vand.u32 %v232, 4294901760
    %v234 = vsub.f32 %v232, %v233
    %v235 = vand.u32 %v234, 4294901760
    %236 = vmatpush1.msra.mxu0 %v235
    %237 = vmatprep.subr.mxu0 0.0
    %v238 = vand.u32 %v37, 4294901760
    %v239 = vsub.f32 %v37, %v238
    %v240 = vand.u32 %v239, 4294901760
    %v241 = vsub.f32 %v239, %v240
    %v242 = vand.u32 %v241, 4294901760
    %243 = vmatpush1.msra.mxu0 %v242
    %244 = vmatprep.subr.mxu0 0.0
    %v245 = vand.u32 %v38, 4294901760
    %v246 = vsub.f32 %v38, %v245
    %v247 = vand.u32 %v246, 4294901760
    %v248 = vsub.f32 %v246, %v247
    %v249 = vand.u32 %v248, 4294901760
    %250 = vmatpush1.msra.mxu0 %v249
    %251 = vmatprep.subr.mxu0 0.0
    %v252 = vand.u32 %v39, 4294901760
    %v253 = vsub.f32 %v39, %v252
    %v254 = vand.u32 %v253, 4294901760
    %v255 = vsub.f32 %v253, %v254
    %v256 = vand.u32 %v255, 4294901760
    %257 = vmatpush1.msra.mxu0 %v256
    %258 = vmatprep.subr.mxu0 0.0
    %v259 = vand.u32 %v40, 4294901760
    %v260 = vsub.f32 %v40, %v259
    %v261 = vand.u32 %v260, 4294901760
    %v262 = vsub.f32 %v260, %v261
    %v263 = vand.u32 %v262, 4294901760
    %264 = vmatpush1.msra.mxu0 %v263
    %265 = vmatprep.subr.mxu0 0.0
    %v266 = vand.u32 %v41, 4294901760
    %v267 = vsub.f32 %v41, %v266
    %v268 = vand.u32 %v267, 4294901760
    %v269 = vsub.f32 %v267, %v268
    %v270 = vand.u32 %v269, 4294901760
    %271 = vmatpush1.msra.mxu0 %v270
    %272 = vmatprep.subr.mxu0 0.0
    %v273 = vand.u32 %v42, 4294901760
    %v274 = vsub.f32 %v42, %v273
    %v275 = vand.u32 %v274, 4294901760
    %v276 = vsub.f32 %v274, %v275
    %v277 = vand.u32 %v276, 4294901760
    %278 = vmatpush1.msra.mxu0 %v277
    %279 = vmatprep.subr.mxu0 0.0
    %v280 = vand.u32 %v43, 4294901760
    %v281 = vsub.f32 %v43, %v280
    %v282 = vand.u32 %v281, 4294901760
    %v283 = vsub.f32 %v281, %v282
    %v284 = vand.u32 %v283, 4294901760
    %285 = vmatpush1.msra.mxu0 %v284
    %286 = vmatprep.subr.mxu0 0.0
    %v287 = vand.u32 %v44, 4294901760
    %v288 = vsub.f32 %v44, %v287
    %v289 = vand.u32 %v288, 4294901760
    %v290 = vsub.f32 %v288, %v289
    %v291 = vand.u32 %v290, 4294901760
    %292 = vmatpush1.msra.mxu0 %v291
    %293 = vmatprep.subr.mxu0 0.0
    %v294 = vand.u32 %v89, 4294901760
    %v295 = vsub.f32 %v89, %v294
    %v296 = vand.u32 %v295, 4294901760
    %v297 = vsub.f32 %v295, %v296
    %v298 = vand.u32 %v297, 4294901760
    %299 = vmatpush1.msra.mxu0 %v298
    %300 = vmatprep.subr.mxu0 0.0
    %301 = vmatpush1.msra.mxu0 0.0
    %302 = vmatprep.subr.mxu0 0.0
    %303 = vmatpush1.msra.mxu0 0.0
    %304 = vmatprep.subr.mxu0 0.0
    %305 = vmatpush1.msra.mxu0 0.0
    %306 = vmatprep.subr.mxu0 0.0
    %307 = vmatpush1.msra.mxu0 0.0
    %308 = vmatprep.subr.mxu0 0.0
    %309 = vmatpush1.msra.mxu0 0.0
    %310 = vmatprep.subr.mxu0 0.0
    %311 = vmatpush1.msra.mxu0 0.0
    %312 = vmatprep.subr.mxu0 0.0
    %313 = vmatpush1.msra.mxu0 0.0
    %314 = vmatprep.subr.mxu0 0.0
    %315 = vmatpush1.msra.mxu0 0.0
    %316 = vmatprep.subr.mxu0 0.0
    %317 = vmatpush1.msra.mxu0 0.0
    %318 = vmatprep.subr.mxu0 0.0
    %319 = vmatpush1.msra.mxu0 0.0
    %320 = vmatprep.subr.mxu0 0.0
    %321 = vmatpush1.msra.mxu0 0.0
    %322 = vmatprep.subr.mxu0 0.0
    %323 = vmatpush1.msra.mxu0 0.0
    %324 = vmatprep.subr.mxu0 0.0
    %325 = vmatpush1.msra.mxu0 0.0
    %326 = vmatprep.subr.mxu0 0.0
    %327 = vmatpush1.msra.mxu0 0.0
    %328 = vmatprep.subr.mxu0 0.0
    %329 = vmatpush1.msra.mxu0 0.0
    %330 = vmatprep.subr.mxu0 0.0
    %331 = vmatpush1.msra.mxu0 0.0
    %332 = vmatprep.subr.mxu0 0.0
    %333 = vmatpush1.msra.mxu0 0.0
    %334 = vmatprep.subr.mxu0 0.0
    %335 = vmatpush1.msra.mxu0 0.0
    %336 = vmatprep.subr.mxu0 0.0
    %337 = vmatpush1.msra.mxu0 0.0
    %338 = vmatprep.mubr.f32.mxu0 0.0
    %v339 = vand.u32 %v76, 4294901760
    %340 = vmatmul.mubr.f32.gmra.mrb[0].mxu0 %v339
    %v341 = vpop.f32.mrb[0].mxu0
    %v342 = vadd.f32 %v176, %v341
    %v343 = vpop.f32.mrb[0].mxu0
    %344 = vmatprep.mubr.f32.mxu0 0.0
    %v345 = vand.u32 %v79, 4294901760
    %346 = vmatmul.mubr.f32.gmra.mrb[0].mxu0 %v345
    %v347 = vpop.f32.mrb[0].mxu0
    %v348 = vadd.f32 %v186, %v347
    %v349 = vpop.f32.mrb[0].mxu0
    %350 = vmatprep.mubr.f32.mxu0 0.0
    %v351 = vand.u32 %v82, 4294901760
    %352 = vmatmul.mubr.f32.gmra.mrb[0].mxu0 %v351
    %v353 = vpop.f32.mrb[0].mxu0
    %v354 = vadd.f32 %v196, %v353
    %v355 = vpop.f32.mrb[0].mxu0
    %356 = vmatprep.mubr.f32.mxu0 0.0
    %v357 = vand.u32 %v85, 4294901760
    %358 = vmatmul.mubr.f32.gmra.mrb[0].mxu0 %v357
    %v359 = vpop.f32.mrb[0].mxu0
    %v360 = vadd.f32 %v206, %v359
    %v361 = vpop.f32.mrb[0].mxu0
    %362 = vdwg.mxu0
    %363 = vmatprep.subr.mxu0 0.0
    %v364 = vand.u32 %v33, 4294901760
    %v365 = vsub.f32 %v33, %v364
    %366 = vmatpush1.msra.mxu0 %v365
    %367 = vmatprep.subr.mxu0 0.0
    %v368 = vand.u32 %v34, 4294901760
    %v369 = vsub.f32 %v34, %v368
    %370 = vmatpush1.msra.mxu0 %v369
    %371 = vmatprep.subr.mxu0 0.0
    %v372 = vand.u32 %v35, 4294901760
    %v373 = vsub.f32 %v35, %v372
    %374 = vmatpush1.msra.mxu0 %v373
    %375 = vmatprep.subr.mxu0 0.0
    %v376 = vand.u32 %v36, 4294901760
    %v377 = vsub.f32 %v36, %v376
    %378 = vmatpush1.msra.mxu0 %v377
    %379 = vmatprep.subr.mxu0 0.0
    %v380 = vand.u32 %v37, 4294901760
    %v381 = vsub.f32 %v37, %v380
    %382 = vmatpush1.msra.mxu0 %v381
    %383 = vmatprep.subr.mxu0 0.0
    %v384 = vand.u32 %v38, 4294901760
    %v385 = vsub.f32 %v38, %v384
    %386 = vmatpush1.msra.mxu0 %v385
    %387 = vmatprep.subr.mxu0 0.0
    %v388 = vand.u32 %v39, 4294901760
    %v389 = vsub.f32 %v39, %v388
    %390 = vmatpush1.msra.mxu0 %v389
    %391 = vmatprep.subr.mxu0 0.0
    %v392 = vand.u32 %v40, 4294901760
    %v393 = vsub.f32 %v40, %v392
    %394 = vmatpush1.msra.mxu0 %v393
    %395 = vmatprep.subr.mxu0 0.0
    %v396 = vand.u32 %v41, 4294901760
    %v397 = vsub.f32 %v41, %v396
    %398 = vmatpush1.msra.mxu0 %v397
    %399 = vmatprep.subr.mxu0 0.0
    %v400 = vand.u32 %v42, 4294901760
    %v401 = vsub.f32 %v42, %v400
    %402 = vmatpush1.msra.mxu0 %v401
    %403 = vmatprep.subr.mxu0 0.0
    %v404 = vand.u32 %v43, 4294901760
    %v405 = vsub.f32 %v43, %v404
    %406 = vmatpush1.msra.mxu0 %v405
    %407 = vmatprep.subr.mxu0 0.0
    %v408 = vand.u32 %v44, 4294901760
    %v409 = vsub.f32 %v44, %v408
    %410 = vmatpush1.msra.mxu0 %v409
    %411 = vmatprep.subr.mxu0 0.0
    %v412 = vand.u32 %v89, 4294901760
    %v413 = vsub.f32 %v89, %v412
    %414 = vmatpush1.msra.mxu0 %v413
    %415 = vmatprep.subr.mxu0 0.0
    %416 = vmatpush1.msra.mxu0 0.0
    %417 = vmatprep.subr.mxu0 0.0
    %418 = vmatpush1.msra.mxu0 0.0
    %419 = vmatprep.subr.mxu0 0.0
    %420 = vmatpush1.msra.mxu0 0.0
    %421 = vmatprep.subr.mxu0 0.0
    %422 = vmatpush1.msra.mxu0 0.0
    %423 = vmatprep.subr.mxu0 0.0
    %424 = vmatpush1.msra.mxu0 0.0
    %425 = vmatprep.subr.mxu0 0.0
    %426 = vmatpush1.msra.mxu0 0.0
    %427 = vmatprep.subr.mxu0 0.0
    %428 = vmatpush1.msra.mxu0 0.0
    %429 = vmatprep.subr.mxu0 0.0
    %430 = vmatpush1.msra.mxu0 0.0
    %431 = vmatprep.subr.mxu0 0.0
    %432 = vmatpush1.msra.mxu0 0.0
    %433 = vmatprep.subr.mxu0 0.0
    %434 = vmatpush1.msra.mxu0 0.0
    %435 = vmatprep.subr.mxu0 0.0
    %436 = vmatpush1.msra.mxu0 0.0
    %437 = vmatprep.subr.mxu0 0.0
    %438 = vmatpush1.msra.mxu0 0.0
    %439 = vmatprep.subr.mxu0 0.0
    %440 = vmatpush1.msra.mxu0 0.0
    %441 = vmatprep.subr.mxu0 0.0
    %442 = vmatpush1.msra.mxu0 0.0
    %443 = vmatprep.subr.mxu0 0.0
    %444 = vmatpush1.msra.mxu0 0.0
    %445 = vmatprep.subr.mxu0 0.0
    %446 = vmatpush1.msra.mxu0 0.0
    %447 = vmatprep.subr.mxu0 0.0
    %448 = vmatpush1.msra.mxu0 0.0
    %449 = vmatprep.subr.mxu0 0.0
    %450 = vmatpush1.msra.mxu0 0.0
    %451 = vmatprep.subr.mxu0 0.0
    %452 = vmatpush1.msra.mxu0 0.0
    %453 = vmatprep.mubr.f32.mxu0 0.0
    %v454 = vand.u32 %v76, 4294901760
    %v455 = vsub.f32 %v76, %v454
    %456 = vmatmul.mubr.f32.gmra.mrb[0].mxu0 %v455
    %v457 = vpop.f32.mrb[0].mxu0
    %v458 = vadd.f32 %v342, %v457
    %v459 = vpop.f32.mrb[0].mxu0
    %460 = vmatprep.mubr.f32.mxu0 0.0
    %v461 = vand.u32 %v79, 4294901760
    %v462 = vsub.f32 %v79, %v461
    %463 = vmatmul.mubr.f32.gmra.mrb[0].mxu0 %v462
    %v464 = vpop.f32.mrb[0].mxu0
    %v465 = vadd.f32 %v348, %v464
    %v466 = vpop.f32.mrb[0].mxu0
    %467 = vmatprep.mubr.f32.mxu0 0.0
    %v468 = vand.u32 %v82, 4294901760
    %v469 = vsub.f32 %v82, %v468
    %470 = vmatmul.mubr.f32.gmra.mrb[0].mxu0 %v469
    %v471 = vpop.f32.mrb[0].mxu0
    %v472 = vadd.f32 %v354, %v471
    %v473 = vpop.f32.mrb[0].mxu0
    %474 = vmatprep.mubr.f32.mxu0 0.0
    %v475 = vand.u32 %v85, 4294901760
    %v476 = vsub.f32 %v85, %v475
    %477 = vmatmul.mubr.f32.gmra.mrb[0].mxu0 %v476
    %v478 = vpop.f32.mrb[0].mxu0
    %v479 = vadd.f32 %v360, %v478
    %v480 = vpop.f32.mrb[0].mxu0
    %481 = vdwg.mxu0
    %482 = vmatprep.subr.mxu0 0.0
    %v483 = vand.u32 %v33, 4294901760
    %484 = vmatpush1.msra.mxu0 %v483
    %485 = vmatprep.subr.mxu0 0.0
    %v486 = vand.u32 %v34, 4294901760
    %487 = vmatpush1.msra.mxu0 %v486
    %488 = vmatprep.subr.mxu0 0.0
    %v489 = vand.u32 %v35, 4294901760
    %490 = vmatpush1.msra.mxu0 %v489
    %491 = vmatprep.subr.mxu0 0.0
    %v492 = vand.u32 %v36, 4294901760
    %493 = vmatpush1.msra.mxu0 %v492
    %494 = vmatprep.subr.mxu0 0.0
    %v495 = vand.u32 %v37, 4294901760
    %496 = vmatpush1.msra.mxu0 %v495
    %497 = vmatprep.subr.mxu0 0.0
    %v498 = vand.u32 %v38, 4294901760
    %499 = vmatpush1.msra.mxu0 %v498
    %500 = vmatprep.subr.mxu0 0.0
    %v501 = vand.u32 %v39, 4294901760
    %502 = vmatpush1.msra.mxu0 %v501
    %503 = vmatprep.subr.mxu0 0.0
    %v504 = vand.u32 %v40, 4294901760
    %505 = vmatpush1.msra.mxu0 %v504
    %506 = vmatprep.subr.mxu0 0.0
    %v507 = vand.u32 %v41, 4294901760
    %508 = vmatpush1.msra.mxu0 %v507
    %509 = vmatprep.subr.mxu0 0.0
    %v510 = vand.u32 %v42, 4294901760
    %511 = vmatpush1.msra.mxu0 %v510
    %512 = vmatprep.subr.mxu0 0.0
    %v513 = vand.u32 %v43, 4294901760
    %514 = vmatpush1.msra.mxu0 %v513
    %515 = vmatprep.subr.mxu0 0.0
    %v516 = vand.u32 %v44, 4294901760
    %517 = vmatpush1.msra.mxu0 %v516
    %518 = vmatprep.subr.mxu0 0.0
    %v519 = vand.u32 %v89, 4294901760
    %520 = vmatpush1.msra.mxu0 %v519
    %521 = vmatprep.subr.mxu0 0.0
    %522 = vmatpush1.msra.mxu0 0.0
    %523 = vmatprep.subr.mxu0 0.0
    %524 = vmatpush1.msra.mxu0 0.0
    %525 = vmatprep.subr.mxu0 0.0
    %526 = vmatpush1.msra.mxu0 0.0
    %527 = vmatprep.subr.mxu0 0.0
    %528 = vmatpush1.msra.mxu0 0.0
    %529 = vmatprep.subr.mxu0 0.0
    %530 = vmatpush1.msra.mxu0 0.0
    %531 = vmatprep.subr.mxu0 0.0
    %532 = vmatpush1.msra.mxu0 0.0
    %533 = vmatprep.subr.mxu0 0.0
    %534 = vmatpush1.msra.mxu0 0.0
    %535 = vmatprep.subr.mxu0 0.0
    %536 = vmatpush1.msra.mxu0 0.0
    %537 = vmatprep.subr.mxu0 0.0
    %538 = vmatpush1.msra.mxu0 0.0
    %539 = vmatprep.subr.mxu0 0.0
    %540 = vmatpush1.msra.mxu0 0.0
    %541 = vmatprep.subr.mxu0 0.0
    %542 = vmatpush1.msra.mxu0 0.0
    %543 = vmatprep.subr.mxu0 0.0
    %544 = vmatpush1.msra.mxu0 0.0
    %545 = vmatprep.subr.mxu0 0.0
    %546 = vmatpush1.msra.mxu0 0.0
    %547 = vmatprep.subr.mxu0 0.0
    %548 = vmatpush1.msra.mxu0 0.0
    %549 = vmatprep.subr.mxu0 0.0
    %550 = vmatpush1.msra.mxu0 0.0
    %551 = vmatprep.subr.mxu0 0.0
    %552 = vmatpush1.msra.mxu0 0.0
    %553 = vmatprep.subr.mxu0 0.0
    %554 = vmatpush1.msra.mxu0 0.0
    %555 = vmatprep.subr.mxu0 0.0
    %556 = vmatpush1.msra.mxu0 0.0
    %557 = vmatprep.subr.mxu0 0.0
    %558 = vmatpush1.msra.mxu0 0.0
    %559 = vmatprep.mubr.f32.mxu0 0.0
    %v560 = vand.u32 %v76, 4294901760
    %v561 = vsub.f32 %v76, %v560
    %v562 = vand.u32 %v561, 4294901760
    %563 = vmatmul.mubr.f32.gmra.mrb[0].mxu0 %v562
    %v564 = vpop.f32.mrb[0].mxu0
    %v565 = vadd.f32 %v458, %v564
    %v566 = vpop.f32.mrb[0].mxu0
    %567 = vmatprep.mubr.f32.mxu0 0.0
    %v568 = vand.u32 %v79, 4294901760
    %v569 = vsub.f32 %v79, %v568
    %v570 = vand.u32 %v569, 4294901760
    %571 = vmatmul.mubr.f32.gmra.mrb[0].mxu0 %v570
    %v572 = vpop.f32.mrb[0].mxu0
    %v573 = vadd.f32 %v465, %v572
    %v574 = vpop.f32.mrb[0].mxu0
    %575 = vmatprep.mubr.f32.mxu0 0.0
    %v576 = vand.u32 %v82, 4294901760
    %v577 = vsub.f32 %v82, %v576
    %v578 = vand.u32 %v577, 4294901760
    %579 = vmatmul.mubr.f32.gmra.mrb[0].mxu0 %v578
    %v580 = vpop.f32.mrb[0].mxu0
    %v581 = vadd.f32 %v472, %v580
    %v582 = vpop.f32.mrb[0].mxu0
    %583 = vmatprep.mubr.f32.mxu0 0.0
    %v584 = vand.u32 %v85, 4294901760
    %v585 = vsub.f32 %v85, %v584
    %v586 = vand.u32 %v585, 4294901760
    %587 = vmatmul.mubr.f32.gmra.mrb[0].mxu0 %v586
    %v588 = vpop.f32.mrb[0].mxu0
    %v589 = vadd.f32 %v479, %v588
    %v590 = vpop.f32.mrb[0].mxu0
    %591 = vdwg.mxu0
    %592 = vmatprep.subr.mxu0 0.0
    %v593 = vand.u32 %v33, 4294901760
    %v594 = vsub.f32 %v33, %v593
    %v595 = vand.u32 %v594, 4294901760
    %596 = vmatpush1.msra.mxu0 %v595
    %597 = vmatprep.subr.mxu0 0.0
    %v598 = vand.u32 %v34, 4294901760
    %v599 = vsub.f32 %v34, %v598
    %v600 = vand.u32 %v599, 4294901760
    %601 = vmatpush1.msra.mxu0 %v600
    %602 = vmatprep.subr.mxu0 0.0
    %v603 = vand.u32 %v35, 4294901760
    %v604 = vsub.f32 %v35, %v603
    %v605 = vand.u32 %v604, 4294901760
    %606 = vmatpush1.msra.mxu0 %v605
    %607 = vmatprep.subr.mxu0 0.0
    %v608 = vand.u32 %v36, 4294901760
    %v609 = vsub.f32 %v36, %v608
    %v610 = vand.u32 %v609, 4294901760
    %611 = vmatpush1.msra.mxu0 %v610
    %612 = vmatprep.subr.mxu0 0.0
    %v613 = vand.u32 %v37, 4294901760
    %v614 = vsub.f32 %v37, %v613
    %v615 = vand.u32 %v614, 4294901760
    %616 = vmatpush1.msra.mxu0 %v615
    %617 = vmatprep.subr.mxu0 0.0
    %v618 = vand.u32 %v38, 4294901760
    %v619 = vsub.f32 %v38, %v618
    %v620 = vand.u32 %v619, 4294901760
    %621 = vmatpush1.msra.mxu0 %v620
    %622 = vmatprep.subr.mxu0 0.0
    %v623 = vand.u32 %v39, 4294901760
    %v624 = vsub.f32 %v39, %v623
    %v625 = vand.u32 %v624, 4294901760
    %626 = vmatpush1.msra.mxu0 %v625
    %627 = vmatprep.subr.mxu0 0.0
    %v628 = vand.u32 %v40, 4294901760
    %v629 = vsub.f32 %v40, %v628
    %v630 = vand.u32 %v629, 4294901760
    %631 = vmatpush1.msra.mxu0 %v630
    %632 = vmatprep.subr.mxu0 0.0
    %v633 = vand.u32 %v41, 4294901760
    %v634 = vsub.f32 %v41, %v633
    %v635 = vand.u32 %v634, 4294901760
    %636 = vmatpush1.msra.mxu0 %v635
    %637 = vmatprep.subr.mxu0 0.0
    %v638 = vand.u32 %v42, 4294901760
    %v639 = vsub.f32 %v42, %v638
    %v640 = vand.u32 %v639, 4294901760
    %641 = vmatpush1.msra.mxu0 %v640
    %642 = vmatprep.subr.mxu0 0.0
    %v643 = vand.u32 %v43, 4294901760
    %v644 = vsub.f32 %v43, %v643
    %v645 = vand.u32 %v644, 4294901760
    %646 = vmatpush1.msra.mxu0 %v645
    %647 = vmatprep.subr.mxu0 0.0
    %v648 = vand.u32 %v44, 4294901760
    %v649 = vsub.f32 %v44, %v648
    %v650 = vand.u32 %v649, 4294901760
    %651 = vmatpush1.msra.mxu0 %v650
    %652 = vmatprep.subr.mxu0 0.0
    %v653 = vand.u32 %v89, 4294901760
    %v654 = vsub.f32 %v89, %v653
    %v655 = vand.u32 %v654, 4294901760
    %656 = vmatpush1.msra.mxu0 %v655
    %657 = vmatprep.subr.mxu0 0.0
    %658 = vmatpush1.msra.mxu0 0.0
    %659 = vmatprep.subr.mxu0 0.0
    %660 = vmatpush1.msra.mxu0 0.0
    %661 = vmatprep.subr.mxu0 0.0
    %662 = vmatpush1.msra.mxu0 0.0
    %663 = vmatprep.subr.mxu0 0.0
    %664 = vmatpush1.msra.mxu0 0.0
    %665 = vmatprep.subr.mxu0 0.0
    %666 = vmatpush1.msra.mxu0 0.0
    %667 = vmatprep.subr.mxu0 0.0
    %668 = vmatpush1.msra.mxu0 0.0
    %669 = vmatprep.subr.mxu0 0.0
    %670 = vmatpush1.msra.mxu0 0.0
    %671 = vmatprep.subr.mxu0 0.0
    %672 = vmatpush1.msra.mxu0 0.0
    %673 = vmatprep.subr.mxu0 0.0
    %674 = vmatpush1.msra.mxu0 0.0
    %675 = vmatprep.subr.mxu0 0.0
    %676 = vmatpush1.msra.mxu0 0.0
    %677 = vmatprep.subr.mxu0 0.0
    %678 = vmatpush1.msra.mxu0 0.0
    %679 = vmatprep.subr.mxu0 0.0
    %680 = vmatpush1.msra.mxu0 0.0
    %681 = vmatprep.subr.mxu0 0.0
    %682 = vmatpush1.msra.mxu0 0.0
    %683 = vmatprep.subr.mxu0 0.0
    %684 = vmatpush1.msra.mxu0 0.0
    %685 = vmatprep.subr.mxu0 0.0
    %686 = vmatpush1.msra.mxu0 0.0
    %687 = vmatprep.subr.mxu0 0.0
    %688 = vmatpush1.msra.mxu0 0.0
    %689 = vmatprep.subr.mxu0 0.0
    %690 = vmatpush1.msra.mxu0 0.0
    %691 = vmatprep.subr.mxu0 0.0
    %692 = vmatpush1.msra.mxu0 0.0
    %693 = vmatprep.subr.mxu0 0.0
    %694 = vmatpush1.msra.mxu0 0.0
    %695 = vmatprep.mubr.f32.mxu0 0.0
    %v696 = vand.u32 %v76, 4294901760
    %697 = vmatmul.mubr.f32.gmra.mrb[0].mxu0 %v696
    %v698 = vpop.f32.mrb[0].mxu0
    %v699 = vadd.f32 %v565, %v698
    %v700 = vpop.f32.mrb[0].mxu0
    %701 = vmatprep.mubr.f32.mxu0 0.0
    %v702 = vand.u32 %v79, 4294901760
    %703 = vmatmul.mubr.f32.gmra.mrb[0].mxu0 %v702
    %v704 = vpop.f32.mrb[0].mxu0
    %v705 = vadd.f32 %v573, %v704
    %v706 = vpop.f32.mrb[0].mxu0
    %707 = vmatprep.mubr.f32.mxu0 0.0
    %v708 = vand.u32 %v82, 4294901760
    %709 = vmatmul.mubr.f32.gmra.mrb[0].mxu0 %v708
    %v710 = vpop.f32.mrb[0].mxu0
    %v711 = vadd.f32 %v581, %v710
    %v712 = vpop.f32.mrb[0].mxu0
    %713 = vmatprep.mubr.f32.mxu0 0.0
    %v714 = vand.u32 %v85, 4294901760
    %715 = vmatmul.mubr.f32.gmra.mrb[0].mxu0 %v714
    %v716 = vpop.f32.mrb[0].mxu0
    %v717 = vadd.f32 %v589, %v716
    %v718 = vpop.f32.mrb[0].mxu0
    %719 = vdwg.mxu0
    %720 = vmatprep.subr.mxu0 0.0
    %v721 = vand.u32 %v33, 4294901760
    %722 = vmatpush1.msra.mxu0 %v721
    %723 = vmatprep.subr.mxu0 0.0
    %v724 = vand.u32 %v34, 4294901760
    %725 = vmatpush1.msra.mxu0 %v724
    %726 = vmatprep.subr.mxu0 0.0
    %v727 = vand.u32 %v35, 4294901760
    %728 = vmatpush1.msra.mxu0 %v727
    %729 = vmatprep.subr.mxu0 0.0
    %v730 = vand.u32 %v36, 4294901760
    %731 = vmatpush1.msra.mxu0 %v730
    %732 = vmatprep.subr.mxu0 0.0
    %v733 = vand.u32 %v37, 4294901760
    %734 = vmatpush1.msra.mxu0 %v733
    %735 = vmatprep.subr.mxu0 0.0
    %v736 = vand.u32 %v38, 4294901760
    %737 = vmatpush1.msra.mxu0 %v736
    %738 = vmatprep.subr.mxu0 0.0
    %v739 = vand.u32 %v39, 4294901760
    %740 = vmatpush1.msra.mxu0 %v739
    %741 = vmatprep.subr.mxu0 0.0
    %v742 = vand.u32 %v40, 4294901760
    %743 = vmatpush1.msra.mxu0 %v742
    %744 = vmatprep.subr.mxu0 0.0
    %v745 = vand.u32 %v41, 4294901760
    %746 = vmatpush1.msra.mxu0 %v745
    %747 = vmatprep.subr.mxu0 0.0
    %v748 = vand.u32 %v42, 4294901760
    %749 = vmatpush1.msra.mxu0 %v748
    %750 = vmatprep.subr.mxu0 0.0
    %v751 = vand.u32 %v43, 4294901760
    %752 = vmatpush1.msra.mxu0 %v751
    %753 = vmatprep.subr.mxu0 0.0
    %v754 = vand.u32 %v44, 4294901760
    %755 = vmatpush1.msra.mxu0 %v754
    %756 = vmatprep.subr.mxu0 0.0
    %v757 = vand.u32 %v89, 4294901760
    %758 = vmatpush1.msra.mxu0 %v757
    %759 = vmatprep.subr.mxu0 0.0
    %760 = vmatpush1.msra.mxu0 0.0
    %761 = vmatprep.subr.mxu0 0.0
    %762 = vmatpush1.msra.mxu0 0.0
    %763 = vmatprep.subr.mxu0 0.0
    %764 = vmatpush1.msra.mxu0 0.0
    %765 = vmatprep.subr.mxu0 0.0
    %766 = vmatpush1.msra.mxu0 0.0
    %767 = vmatprep.subr.mxu0 0.0
    %768 = vmatpush1.msra.mxu0 0.0
    %769 = vmatprep.subr.mxu0 0.0
    %770 = vmatpush1.msra.mxu0 0.0
    %771 = vmatprep.subr.mxu0 0.0
    %772 = vmatpush1.msra.mxu0 0.0
    %773 = vmatprep.subr.mxu0 0.0
    %774 = vmatpush1.msra.mxu0 0.0
    %775 = vmatprep.subr.mxu0 0.0
    %776 = vmatpush1.msra.mxu0 0.0
    %777 = vmatprep.subr.mxu0 0.0
    %778 = vmatpush1.msra.mxu0 0.0
    %779 = vmatprep.subr.mxu0 0.0
    %780 = vmatpush1.msra.mxu0 0.0
    %781 = vmatprep.subr.mxu0 0.0
    %782 = vmatpush1.msra.mxu0 0.0
    %783 = vmatprep.subr.mxu0 0.0
    %784 = vmatpush1.msra.mxu0 0.0
    %785 = vmatprep.subr.mxu0 0.0
    %786 = vmatpush1.msra.mxu0 0.0
    %787 = vmatprep.subr.mxu0 0.0
    %788 = vmatpush1.msra.mxu0 0.0
    %789 = vmatprep.subr.mxu0 0.0
    %790 = vmatpush1.msra.mxu0 0.0
    %791 = vmatprep.subr.mxu0 0.0
    %792 = vmatpush1.msra.mxu0 0.0
    %793 = vmatprep.subr.mxu0 0.0
    %794 = vmatpush1.msra.mxu0 0.0
    %795 = vmatprep.subr.mxu0 0.0
    %796 = vmatpush1.msra.mxu0 0.0
    %797 = vmatprep.mubr.f32.mxu0 0.0
    %v798 = vand.u32 %v76, 4294901760
    %799 = vmatmul.mubr.f32.gmra.mrb[0].mxu0 %v798
    %v800 = vpop.f32.mrb[0].mxu0
    %v801 = vadd.f32 %v699, %v800
    %v802 = vpop.f32.mrb[0].mxu0
    %803 = vmatprep.mubr.f32.mxu0 0.0
    %v804 = vand.u32 %v79, 4294901760
    %805 = vmatmul.mubr.f32.gmra.mrb[0].mxu0 %v804
    %v806 = vpop.f32.mrb[0].mxu0
    %v807 = vadd.f32 %v705, %v806
    %v808 = vpop.f32.mrb[0].mxu0
    %809 = vmatprep.mubr.f32.mxu0 0.0
    %v810 = vand.u32 %v82, 4294901760
    %811 = vmatmul.mubr.f32.gmra.mrb[0].mxu0 %v810
    %v812 = vpop.f32.mrb[0].mxu0
    %v813 = vadd.f32 %v711, %v812
    %v814 = vpop.f32.mrb[0].mxu0
    %815 = vmatprep.mubr.f32.mxu0 0.0
    %v816 = vand.u32 %v85, 4294901760
    %817 = vmatmul.mubr.f32.gmra.mrb[0].mxu0 %v816
    %v818 = vpop.f32.mrb[0].mxu0
    %v819 = vadd.f32 %v717, %v818
    %v820 = vpop.f32.mrb[0].mxu0
    %821 = vdwg.mxu0
    %v822 = vmax.f32 %v801, 0.0
    %v823 = vmax.f32 %v807, 0.0
    %v824 = vmax.f32 %v813, 0.0
    %v825 = vmax.f32 %v819, 0.0
    %v826 = vld [vmem:[%s3] sm:$0xff]
    %v827 = vld [vmem:[%s3 + $0x8] sm:$0xff]
    %v828 = vld [vmem:[%s3 + $0x10] sm:$0xf]
    %v829 = vld [vmem:[%s4] sm:$0xff]
    %v830 = vld [vmem:[%s4 + $0x8] sm:$0xff]
    %v831 = vld [vmem:[%s4 + $0x10] sm:$0xf]
    %833 = vset.pattern.permute.xlu0 0
    %834 = vperm.xlu0 %833, %v829
    %v835 = vpop.permute.xlu0 %834
    %838 = vset.pattern.permute.xlu0 0
    %839 = vperm.xlu0 %838, %v830
    %v840 = vpop.permute.xlu0 %839
    %843 = vset.pattern.permute.xlu0 0
    %844 = vperm.xlu0 %843, %v831
    %v845 = vpop.permute.xlu0 %844
    %vm847 = vcmask 244736
    %v849 = vsel %vm847, %v826, 0
    %v852 = vsel %vm847, %v827, 0
    %v855 = vsel %vm847, %v828, 0
    %vm857 = vcmask 1045504
    %v859 = vsel %vm857, %v825, 0
    %861 = vmatprep.subr.mxu0 0.0
    %v862 = vand.u32 %v822, 4294901760
    %863 = vmatpush1.msra.mxu0 %v862
    %864 = vmatprep.subr.mxu0 0.0
    %v865 = vand.u32 %v823, 4294901760
    %866 = vmatpush1.msra.mxu0 %v865
    %867 = vmatprep.subr.mxu0 0.0
    %v868 = vand.u32 %v824, 4294901760
    %869 = vmatpush1.msra.mxu0 %v868
    %870 = vmatprep.subr.mxu0 0.0
    %v871 = vand.u32 %v859, 4294901760
    %872 = vmatpush1.msra.mxu0 %v871
    %873 = vmatprep.subr.mxu0 0.0
    %874 = vmatpush1.msra.mxu0 0.0
    %875 = vmatprep.subr.mxu0 0.0
    %876 = vmatpush1.msra.mxu0 0.0
    %877 = vmatprep.subr.mxu0 0.0
    %878 = vmatpush1.msra.mxu0 0.0
    %879 = vmatprep.subr.mxu0 0.0
    %880 = vmatpush1.msra.mxu0 0.0
    %881 = vmatprep.subr.mxu0 0.0
    %882 = vmatpush1.msra.mxu0 0.0
    %883 = vmatprep.subr.mxu0 0.0
    %884 = vmatpush1.msra.mxu0 0.0
    %885 = vmatprep.subr.mxu0 0.0
    %886 = vmatpush1.msra.mxu0 0.0
    %887 = vmatprep.subr.mxu0 0.0
    %888 = vmatpush1.msra.mxu0 0.0
    %889 = vmatprep.subr.mxu0 0.0
    %890 = vmatpush1.msra.mxu0 0.0
    %891 = vmatprep.subr.mxu0 0.0
    %892 = vmatpush1.msra.mxu0 0.0
    %893 = vmatprep.subr.mxu0 0.0
    %894 = vmatpush1.msra.mxu0 0.0
    %895 = vmatprep.subr.mxu0 0.0
    %896 = vmatpush1.msra.mxu0 0.0
    %897 = vmatprep.subr.mxu0 0.0
    %898 = vmatpush1.msra.mxu0 0.0
    %899 = vmatprep.subr.mxu0 0.0
    %900 = vmatpush1.msra.mxu0 0.0
    %901 = vmatprep.subr.mxu0 0.0
    %902 = vmatpush1.msra.mxu0 0.0
    %903 = vmatprep.subr.mxu0 0.0
    %904 = vmatpush1.msra.mxu0 0.0
    %905 = vmatprep.subr.mxu0 0.0
    %906 = vmatpush1.msra.mxu0 0.0
    %907 = vmatprep.subr.mxu0 0.0
    %908 = vmatpush1.msra.mxu0 0.0
    %909 = vmatprep.subr.mxu0 0.0
    %910 = vmatpush1.msra.mxu0 0.0
    %911 = vmatprep.subr.mxu0 0.0
    %912 = vmatpush1.msra.mxu0 0.0
    %913 = vmatprep.subr.mxu0 0.0
    %914 = vmatpush1.msra.mxu0 0.0
    %915 = vmatprep.subr.mxu0 0.0
    %916 = vmatpush1.msra.mxu0 0.0
    %917 = vmatprep.subr.mxu0 0.0
    %918 = vmatpush1.msra.mxu0 0.0
    %919 = vmatprep.subr.mxu0 0.0
    %920 = vmatpush1.msra.mxu0 0.0
    %921 = vmatprep.subr.mxu0 0.0
    %922 = vmatpush1.msra.mxu0 0.0
    %923 = vmatprep.subr.mxu0 0.0
    %924 = vmatpush1.msra.mxu0 0.0
    %925 = vmatprep.subr.mxu0 0.0
    %926 = vmatpush1.msra.mxu0 0.0
    %927 = vmatprep.subr.mxu0 0.0
    %928 = vmatpush1.msra.mxu0 0.0
    %929 = vmatprep.mubr.f32.mxu0 0.0
    %v930 = vand.u32 %v849, 4294901760
    %v931 = vsub.f32 %v849, %v930
    %v932 = vand.u32 %v931, 4294901760
    %v933 = vsub.f32 %v931, %v932
    %v934 = vand.u32 %v933, 4294901760
    %935 = vmatmul.mubr.f32.gmra.mrb[0].mxu0 %v934
    %v936 = vpop.f32.mrb[0].mxu0
    %v937 = vadd.f32 %v835, %v936
    %v938 = vpop.f32.mrb[0].mxu0
    %939 = vmatprep.mubr.f32.mxu0 0.0
    %v940 = vand.u32 %v852, 4294901760
    %v941 = vsub.f32 %v852, %v940
    %v942 = vand.u32 %v941, 4294901760
    %v943 = vsub.f32 %v941, %v942
    %v944 = vand.u32 %v943, 4294901760
    %945 = vmatmul.mubr.f32.gmra.mrb[0].mxu0 %v944
    %v946 = vpop.f32.mrb[0].mxu0
    %v947 = vadd.f32 %v840, %v946
    %v948 = vpop.f32.mrb[0].mxu0
    %949 = vmatprep.mubr.f32.mxu0 0.0
    %v950 = vand.u32 %v855, 4294901760
    %v951 = vsub.f32 %v855, %v950
    %v952 = vand.u32 %v951, 4294901760
    %v953 = vsub.f32 %v951, %v952
    %v954 = vand.u32 %v953, 4294901760
    %955 = vmatmul.mubr.f32.gmra.mrb[0].mxu0 %v954
    %v956 = vpop.f32.mrb[0].mxu0
    %v957 = vadd.f32 %v845, %v956
    %v958 = vpop.f32.mrb[0].mxu0
    %959 = vdwg.mxu0
    %960 = vmatprep.subr.mxu0 0.0
    %v961 = vand.u32 %v822, 4294901760
    %v962 = vsub.f32 %v822, %v961
    %v963 = vand.u32 %v962, 4294901760
    %v964 = vsub.f32 %v962, %v963
    %v965 = vand.u32 %v964, 4294901760
    %966 = vmatpush1.msra.mxu0 %v965
    %967 = vmatprep.subr.mxu0 0.0
    %v968 = vand.u32 %v823, 4294901760
    %v969 = vsub.f32 %v823, %v968
    %v970 = vand.u32 %v969, 4294901760
    %v971 = vsub.f32 %v969, %v970
    %v972 = vand.u32 %v971, 4294901760
    %973 = vmatpush1.msra.mxu0 %v972
    %974 = vmatprep.subr.mxu0 0.0
    %v975 = vand.u32 %v824, 4294901760
    %v976 = vsub.f32 %v824, %v975
    %v977 = vand.u32 %v976, 4294901760
    %v978 = vsub.f32 %v976, %v977
    %v979 = vand.u32 %v978, 4294901760
    %980 = vmatpush1.msra.mxu0 %v979
    %981 = vmatprep.subr.mxu0 0.0
    %v982 = vand.u32 %v859, 4294901760
    %v983 = vsub.f32 %v859, %v982
    %v984 = vand.u32 %v983, 4294901760
    %v985 = vsub.f32 %v983, %v984
    %v986 = vand.u32 %v985, 4294901760
    %987 = vmatpush1.msra.mxu0 %v986
    %988 = vmatprep.subr.mxu0 0.0
    %989 = vmatpush1.msra.mxu0 0.0
    %990 = vmatprep.subr.mxu0 0.0
    %991 = vmatpush1.msra.mxu0 0.0
    %992 = vmatprep.subr.mxu0 0.0
    %993 = vmatpush1.msra.mxu0 0.0
    %994 = vmatprep.subr.mxu0 0.0
    %995 = vmatpush1.msra.mxu0 0.0
    %996 = vmatprep.subr.mxu0 0.0
    %997 = vmatpush1.msra.mxu0 0.0
    %998 = vmatprep.subr.mxu0 0.0
    %999 = vmatpush1.msra.mxu0 0.0
    %1000 = vmatprep.subr.mxu0 0.0
    %1001 = vmatpush1.msra.mxu0 0.0
    %1002 = vmatprep.subr.mxu0 0.0
    %1003 = vmatpush1.msra.mxu0 0.0
    %1004 = vmatprep.subr.mxu0 0.0
    %1005 = vmatpush1.msra.mxu0 0.0
    %1006 = vmatprep.subr.mxu0 0.0
    %1007 = vmatpush1.msra.mxu0 0.0
    %1008 = vmatprep.subr.mxu0 0.0
    %1009 = vmatpush1.msra.mxu0 0.0
    %1010 = vmatprep.subr.mxu0 0.0
    %1011 = vmatpush1.msra.mxu0 0.0
    %1012 = vmatprep.subr.mxu0 0.0
    %1013 = vmatpush1.msra.mxu0 0.0
    %1014 = vmatprep.subr.mxu0 0.0
    %1015 = vmatpush1.msra.mxu0 0.0
    %1016 = vmatprep.subr.mxu0 0.0
    %1017 = vmatpush1.msra.mxu0 0.0
    %1018 = vmatprep.subr.mxu0 0.0
    %1019 = vmatpush1.msra.mxu0 0.0
    %1020 = vmatprep.subr.mxu0 0.0
    %1021 = vmatpush1.msra.mxu0 0.0
    %1022 = vmatprep.subr.mxu0 0.0
    %1023 = vmatpush1.msra.mxu0 0.0
    %1024 = vmatprep.subr.mxu0 0.0
    %1025 = vmatpush1.msra.mxu0 0.0
    %1026 = vmatprep.subr.mxu0 0.0
    %1027 = vmatpush1.msra.mxu0 0.0
    %1028 = vmatprep.subr.mxu0 0.0
    %1029 = vmatpush1.msra.mxu0 0.0
    %1030 = vmatprep.subr.mxu0 0.0
    %1031 = vmatpush1.msra.mxu0 0.0
    %1032 = vmatprep.subr.mxu0 0.0
    %1033 = vmatpush1.msra.mxu0 0.0
    %1034 = vmatprep.subr.mxu0 0.0
    %1035 = vmatpush1.msra.mxu0 0.0
    %1036 = vmatprep.subr.mxu0 0.0
    %1037 = vmatpush1.msra.mxu0 0.0
    %1038 = vmatprep.subr.mxu0 0.0
    %1039 = vmatpush1.msra.mxu0 0.0
    %1040 = vmatprep.subr.mxu0 0.0
    %1041 = vmatpush1.msra.mxu0 0.0
    %1042 = vmatprep.subr.mxu0 0.0
    %1043 = vmatpush1.msra.mxu0 0.0
    %1044 = vmatprep.mubr.f32.mxu0 0.0
    %v1045 = vand.u32 %v849, 4294901760
    %1046 = vmatmul.mubr.f32.gmra.mrb[0].mxu0 %v1045
    %v1047 = vpop.f32.mrb[0].mxu0
    %v1048 = vadd.f32 %v937, %v1047
    %v1049 = vpop.f32.mrb[0].mxu0
    %1050 = vmatprep.mubr.f32.mxu0 0.0
    %v1051 = vand.u32 %v852, 4294901760
    %1052 = vmatmul.mubr.f32.gmra.mrb[0].mxu0 %v1051
    %v1053 = vpop.f32.mrb[0].mxu0
    %v1054 = vadd.f32 %v947, %v1053
    %v1055 = vpop.f32.mrb[0].mxu0
    %1056 = vmatprep.mubr.f32.mxu0 0.0
    %v1057 = vand.u32 %v855, 4294901760
    %1058 = vmatmul.mubr.f32.gmra.mrb[0].mxu0 %v1057
    %v1059 = vpop.f32.mrb[0].mxu0
    %v1060 = vadd.f32 %v957, %v1059
    %v1061 = vpop.f32.mrb[0].mxu0
    %1062 = vdwg.mxu0
    %1063 = vmatprep.subr.mxu0 0.0
    %v1064 = vand.u32 %v822, 4294901760
    %v1065 = vsub.f32 %v822, %v1064
    %1066 = vmatpush1.msra.mxu0 %v1065
    %1067 = vmatprep.subr.mxu0 0.0
    %v1068 = vand.u32 %v823, 4294901760
    %v1069 = vsub.f32 %v823, %v1068
    %1070 = vmatpush1.msra.mxu0 %v1069
    %1071 = vmatprep.subr.mxu0 0.0
    %v1072 = vand.u32 %v824, 4294901760
    %v1073 = vsub.f32 %v824, %v1072
    %1074 = vmatpush1.msra.mxu0 %v1073
    %1075 = vmatprep.subr.mxu0 0.0
    %v1076 = vand.u32 %v859, 4294901760
    %v1077 = vsub.f32 %v859, %v1076
    %1078 = vmatpush1.msra.mxu0 %v1077
    %1079 = vmatprep.subr.mxu0 0.0
    %1080 = vmatpush1.msra.mxu0 0.0
    %1081 = vmatprep.subr.mxu0 0.0
    %1082 = vmatpush1.msra.mxu0 0.0
    %1083 = vmatprep.subr.mxu0 0.0
    %1084 = vmatpush1.msra.mxu0 0.0
    %1085 = vmatprep.subr.mxu0 0.0
    %1086 = vmatpush1.msra.mxu0 0.0
    %1087 = vmatprep.subr.mxu0 0.0
    %1088 = vmatpush1.msra.mxu0 0.0
    %1089 = vmatprep.subr.mxu0 0.0
    %1090 = vmatpush1.msra.mxu0 0.0
    %1091 = vmatprep.subr.mxu0 0.0
    %1092 = vmatpush1.msra.mxu0 0.0
    %1093 = vmatprep.subr.mxu0 0.0
    %1094 = vmatpush1.msra.mxu0 0.0
    %1095 = vmatprep.subr.mxu0 0.0
    %1096 = vmatpush1.msra.mxu0 0.0
    %1097 = vmatprep.subr.mxu0 0.0
    %1098 = vmatpush1.msra.mxu0 0.0
    %1099 = vmatprep.subr.mxu0 0.0
    %1100 = vmatpush1.msra.mxu0 0.0
    %1101 = vmatprep.subr.mxu0 0.0
    %1102 = vmatpush1.msra.mxu0 0.0
    %1103 = vmatprep.subr.mxu0 0.0
    %1104 = vmatpush1.msra.mxu0 0.0
    %1105 = vmatprep.subr.mxu0 0.0
    %1106 = vmatpush1.msra.mxu0 0.0
    %1107 = vmatprep.subr.mxu0 0.0
    %1108 = vmatpush1.msra.mxu0 0.0
    %1109 = vmatprep.subr.mxu0 0.0
    %1110 = vmatpush1.msra.mxu0 0.0
    %1111 = vmatprep.subr.mxu0 0.0
    %1112 = vmatpush1.msra.mxu0 0.0
    %1113 = vmatprep.subr.mxu0 0.0
    %1114 = vmatpush1.msra.mxu0 0.0
    %1115 = vmatprep.subr.mxu0 0.0
    %1116 = vmatpush1.msra.mxu0 0.0
    %1117 = vmatprep.subr.mxu0 0.0
    %1118 = vmatpush1.msra.mxu0 0.0
    %1119 = vmatprep.subr.mxu0 0.0
    %1120 = vmatpush1.msra.mxu0 0.0
    %1121 = vmatprep.subr.mxu0 0.0
    %1122 = vmatpush1.msra.mxu0 0.0
    %1123 = vmatprep.subr.mxu0 0.0
    %1124 = vmatpush1.msra.mxu0 0.0
    %1125 = vmatprep.subr.mxu0 0.0
    %1126 = vmatpush1.msra.mxu0 0.0
    %1127 = vmatprep.subr.mxu0 0.0
    %1128 = vmatpush1.msra.mxu0 0.0
    %1129 = vmatprep.subr.mxu0 0.0
    %1130 = vmatpush1.msra.mxu0 0.0
    %1131 = vmatprep.subr.mxu0 0.0
    %1132 = vmatpush1.msra.mxu0 0.0
    %1133 = vmatprep.subr.mxu0 0.0
    %1134 = vmatpush1.msra.mxu0 0.0
    %1135 = vmatprep.mubr.f32.mxu0 0.0
    %v1136 = vand.u32 %v849, 4294901760
    %v1137 = vsub.f32 %v849, %v1136
    %1138 = vmatmul.mubr.f32.gmra.mrb[0].mxu0 %v1137
    %v1139 = vpop.f32.mrb[0].mxu0
    %v1140 = vadd.f32 %v1048, %v1139
    %v1141 = vpop.f32.mrb[0].mxu0
    %1142 = vmatprep.mubr.f32.mxu0 0.0
    %v1143 = vand.u32 %v852, 4294901760
    %v1144 = vsub.f32 %v852, %v1143
    %1145 = vmatmul.mubr.f32.gmra.mrb[0].mxu0 %v1144
    %v1146 = vpop.f32.mrb[0].mxu0
    %v1147 = vadd.f32 %v1054, %v1146
    %v1148 = vpop.f32.mrb[0].mxu0
    %1149 = vmatprep.mubr.f32.mxu0 0.0
    %v1150 = vand.u32 %v855, 4294901760
    %v1151 = vsub.f32 %v855, %v1150
    %1152 = vmatmul.mubr.f32.gmra.mrb[0].mxu0 %v1151
    %v1153 = vpop.f32.mrb[0].mxu0
    %v1154 = vadd.f32 %v1060, %v1153
    %v1155 = vpop.f32.mrb[0].mxu0
    %1156 = vdwg.mxu0
    %1157 = vmatprep.subr.mxu0 0.0
    %v1158 = vand.u32 %v822, 4294901760
    %1159 = vmatpush1.msra.mxu0 %v1158
    %1160 = vmatprep.subr.mxu0 0.0
    %v1161 = vand.u32 %v823, 4294901760
    %1162 = vmatpush1.msra.mxu0 %v1161
    %1163 = vmatprep.subr.mxu0 0.0
    %v1164 = vand.u32 %v824, 4294901760
    %1165 = vmatpush1.msra.mxu0 %v1164
    %1166 = vmatprep.subr.mxu0 0.0
    %v1167 = vand.u32 %v859, 4294901760
    %1168 = vmatpush1.msra.mxu0 %v1167
    %1169 = vmatprep.subr.mxu0 0.0
    %1170 = vmatpush1.msra.mxu0 0.0
    %1171 = vmatprep.subr.mxu0 0.0
    %1172 = vmatpush1.msra.mxu0 0.0
    %1173 = vmatprep.subr.mxu0 0.0
    %1174 = vmatpush1.msra.mxu0 0.0
    %1175 = vmatprep.subr.mxu0 0.0
    %1176 = vmatpush1.msra.mxu0 0.0
    %1177 = vmatprep.subr.mxu0 0.0
    %1178 = vmatpush1.msra.mxu0 0.0
    %1179 = vmatprep.subr.mxu0 0.0
    %1180 = vmatpush1.msra.mxu0 0.0
    %1181 = vmatprep.subr.mxu0 0.0
    %1182 = vmatpush1.msra.mxu0 0.0
    %1183 = vmatprep.subr.mxu0 0.0
    %1184 = vmatpush1.msra.mxu0 0.0
    %1185 = vmatprep.subr.mxu0 0.0
    %1186 = vmatpush1.msra.mxu0 0.0
    %1187 = vmatprep.subr.mxu0 0.0
    %1188 = vmatpush1.msra.mxu0 0.0
    %1189 = vmatprep.subr.mxu0 0.0
    %1190 = vmatpush1.msra.mxu0 0.0
    %1191 = vmatprep.subr.mxu0 0.0
    %1192 = vmatpush1.msra.mxu0 0.0
    %1193 = vmatprep.subr.mxu0 0.0
    %1194 = vmatpush1.msra.mxu0 0.0
    %1195 = vmatprep.subr.mxu0 0.0
    %1196 = vmatpush1.msra.mxu0 0.0
    %1197 = vmatprep.subr.mxu0 0.0
    %1198 = vmatpush1.msra.mxu0 0.0
    %1199 = vmatprep.subr.mxu0 0.0
    %1200 = vmatpush1.msra.mxu0 0.0
    %1201 = vmatprep.subr.mxu0 0.0
    %1202 = vmatpush1.msra.mxu0 0.0
    %1203 = vmatprep.subr.mxu0 0.0
    %1204 = vmatpush1.msra.mxu0 0.0
    %1205 = vmatprep.subr.mxu0 0.0
    %1206 = vmatpush1.msra.mxu0 0.0
    %1207 = vmatprep.subr.mxu0 0.0
    %1208 = vmatpush1.msra.mxu0 0.0
    %1209 = vmatprep.subr.mxu0 0.0
    %1210 = vmatpush1.msra.mxu0 0.0
    %1211 = vmatprep.subr.mxu0 0.0
    %1212 = vmatpush1.msra.mxu0 0.0
    %1213 = vmatprep.subr.mxu0 0.0
    %1214 = vmatpush1.msra.mxu0 0.0
    %1215 = vmatprep.subr.mxu0 0.0
    %1216 = vmatpush1.msra.mxu0 0.0
    %1217 = vmatprep.subr.mxu0 0.0
    %1218 = vmatpush1.msra.mxu0 0.0
    %1219 = vmatprep.subr.mxu0 0.0
    %1220 = vmatpush1.msra.mxu0 0.0
    %1221 = vmatprep.subr.mxu0 0.0
    %1222 = vmatpush1.msra.mxu0 0.0
    %1223 = vmatprep.subr.mxu0 0.0
    %1224 = vmatpush1.msra.mxu0 0.0
    %1225 = vmatprep.mubr.f32.mxu0 0.0
    %v1226 = vand.u32 %v849, 4294901760
    %v1227 = vsub.f32 %v849, %v1226
    %v1228 = vand.u32 %v1227, 4294901760
    %1229 = vmatmul.mubr.f32.gmra.mrb[0].mxu0 %v1228
    %v1230 = vpop.f32.mrb[0].mxu0
    %v1231 = vadd.f32 %v1140, %v1230
    %v1232 = vpop.f32.mrb[0].mxu0
    %1233 = vmatprep.mubr.f32.mxu0 0.0
    %v1234 = vand.u32 %v852, 4294901760
    %v1235 = vsub.f32 %v852, %v1234
    %v1236 = vand.u32 %v1235, 4294901760
    %1237 = vmatmul.mubr.f32.gmra.mrb[0].mxu0 %v1236
    %v1238 = vpop.f32.mrb[0].mxu0
    %v1239 = vadd.f32 %v1147, %v1238
    %v1240 = vpop.f32.mrb[0].mxu0
    %1241 = vmatprep.mubr.f32.mxu0 0.0
    %v1242 = vand.u32 %v855, 4294901760
    %v1243 = vsub.f32 %v855, %v1242
    %v1244 = vand.u32 %v1243, 4294901760
    %1245 = vmatmul.mubr.f32.gmra.mrb[0].mxu0 %v1244
    %v1246 = vpop.f32.mrb[0].mxu0
    %v1247 = vadd.f32 %v1154, %v1246
    %v1248 = vpop.f32.mrb[0].mxu0
    %1249 = vdwg.mxu0
    %1250 = vmatprep.subr.mxu0 0.0
    %v1251 = vand.u32 %v822, 4294901760
    %v1252 = vsub.f32 %v822, %v1251
    %v1253 = vand.u32 %v1252, 4294901760
    %1254 = vmatpush1.msra.mxu0 %v1253
    %1255 = vmatprep.subr.mxu0 0.0
    %v1256 = vand.u32 %v823, 4294901760
    %v1257 = vsub.f32 %v823, %v1256
    %v1258 = vand.u32 %v1257, 4294901760
    %1259 = vmatpush1.msra.mxu0 %v1258
    %1260 = vmatprep.subr.mxu0 0.0
    %v1261 = vand.u32 %v824, 4294901760
    %v1262 = vsub.f32 %v824, %v1261
    %v1263 = vand.u32 %v1262, 4294901760
    %1264 = vmatpush1.msra.mxu0 %v1263
    %1265 = vmatprep.subr.mxu0 0.0
    %v1266 = vand.u32 %v859, 4294901760
    %v1267 = vsub.f32 %v859, %v1266
    %v1268 = vand.u32 %v1267, 4294901760
    %1269 = vmatpush1.msra.mxu0 %v1268
    %1270 = vmatprep.subr.mxu0 0.0
    %1271 = vmatpush1.msra.mxu0 0.0
    %1272 = vmatprep.subr.mxu0 0.0
    %1273 = vmatpush1.msra.mxu0 0.0
    %1274 = vmatprep.subr.mxu0 0.0
    %1275 = vmatpush1.msra.mxu0 0.0
    %1276 = vmatprep.subr.mxu0 0.0
    %1277 = vmatpush1.msra.mxu0 0.0
    %1278 = vmatprep.subr.mxu0 0.0
    %1279 = vmatpush1.msra.mxu0 0.0
    %1280 = vmatprep.subr.mxu0 0.0
    %1281 = vmatpush1.msra.mxu0 0.0
    %1282 = vmatprep.subr.mxu0 0.0
    %1283 = vmatpush1.msra.mxu0 0.0
    %1284 = vmatprep.subr.mxu0 0.0
    %1285 = vmatpush1.msra.mxu0 0.0
    %1286 = vmatprep.subr.mxu0 0.0
    %1287 = vmatpush1.msra.mxu0 0.0
    %1288 = vmatprep.subr.mxu0 0.0
    %1289 = vmatpush1.msra.mxu0 0.0
    %1290 = vmatprep.subr.mxu0 0.0
    %1291 = vmatpush1.msra.mxu0 0.0
    %1292 = vmatprep.subr.mxu0 0.0
    %1293 = vmatpush1.msra.mxu0 0.0
    %1294 = vmatprep.subr.mxu0 0.0
    %1295 = vmatpush1.msra.mxu0 0.0
    %1296 = vmatprep.subr.mxu0 0.0
    %1297 = vmatpush1.msra.mxu0 0.0
    %1298 = vmatprep.subr.mxu0 0.0
    %1299 = vmatpush1.msra.mxu0 0.0
    %1300 = vmatprep.subr.mxu0 0.0
    %1301 = vmatpush1.msra.mxu0 0.0
    %1302 = vmatprep.subr.mxu0 0.0
    %1303 = vmatpush1.msra.mxu0 0.0
    %1304 = vmatprep.subr.mxu0 0.0
    %1305 = vmatpush1.msra.mxu0 0.0
    %1306 = vmatprep.subr.mxu0 0.0
    %1307 = vmatpush1.msra.mxu0 0.0
    %1308 = vmatprep.subr.mxu0 0.0
    %1309 = vmatpush1.msra.mxu0 0.0
    %1310 = vmatprep.subr.mxu0 0.0
    %1311 = vmatpush1.msra.mxu0 0.0
    %1312 = vmatprep.subr.mxu0 0.0
    %1313 = vmatpush1.msra.mxu0 0.0
    %1314 = vmatprep.subr.mxu0 0.0
    %1315 = vmatpush1.msra.mxu0 0.0
    %1316 = vmatprep.subr.mxu0 0.0
    %1317 = vmatpush1.msra.mxu0 0.0
    %1318 = vmatprep.subr.mxu0 0.0
    %1319 = vmatpush1.msra.mxu0 0.0
    %1320 = vmatprep.subr.mxu0 0.0
    %1321 = vmatpush1.msra.mxu0 0.0
    %1322 = vmatprep.subr.mxu0 0.0
    %1323 = vmatpush1.msra.mxu0 0.0
    %1324 = vmatprep.subr.mxu0 0.0
    %1325 = vmatpush1.msra.mxu0 0.0
    %1326 = vmatprep.mubr.f32.mxu0 0.0
    %v1327 = vand.u32 %v849, 4294901760
    %1328 = vmatmul.mubr.f32.gmra.mrb[0].mxu0 %v1327
    %v1329 = vpop.f32.mrb[0].mxu0
    %v1330 = vadd.f32 %v1231, %v1329
    %v1331 = vpop.f32.mrb[0].mxu0
    %1332 = vmatprep.mubr.f32.mxu0 0.0
    %v1333 = vand.u32 %v852, 4294901760
    %1334 = vmatmul.mubr.f32.gmra.mrb[0].mxu0 %v1333
    %v1335 = vpop.f32.mrb[0].mxu0
    %v1336 = vadd.f32 %v1239, %v1335
    %v1337 = vpop.f32.mrb[0].mxu0
    %1338 = vmatprep.mubr.f32.mxu0 0.0
    %v1339 = vand.u32 %v855, 4294901760
    %1340 = vmatmul.mubr.f32.gmra.mrb[0].mxu0 %v1339
    %v1341 = vpop.f32.mrb[0].mxu0
    %v1342 = vadd.f32 %v1247, %v1341
    %v1343 = vpop.f32.mrb[0].mxu0
    %1344 = vdwg.mxu0
    %1345 = vmatprep.subr.mxu0 0.0
    %v1346 = vand.u32 %v822, 4294901760
    %1347 = vmatpush1.msra.mxu0 %v1346
    %1348 = vmatprep.subr.mxu0 0.0
    %v1349 = vand.u32 %v823, 4294901760
    %1350 = vmatpush1.msra.mxu0 %v1349
    %1351 = vmatprep.subr.mxu0 0.0
    %v1352 = vand.u32 %v824, 4294901760
    %1353 = vmatpush1.msra.mxu0 %v1352
    %1354 = vmatprep.subr.mxu0 0.0
    %v1355 = vand.u32 %v859, 4294901760
    %1356 = vmatpush1.msra.mxu0 %v1355
    %1357 = vmatprep.subr.mxu0 0.0
    %1358 = vmatpush1.msra.mxu0 0.0
    %1359 = vmatprep.subr.mxu0 0.0
    %1360 = vmatpush1.msra.mxu0 0.0
    %1361 = vmatprep.subr.mxu0 0.0
    %1362 = vmatpush1.msra.mxu0 0.0
    %1363 = vmatprep.subr.mxu0 0.0
    %1364 = vmatpush1.msra.mxu0 0.0
    %1365 = vmatprep.subr.mxu0 0.0
    %1366 = vmatpush1.msra.mxu0 0.0
    %1367 = vmatprep.subr.mxu0 0.0
    %1368 = vmatpush1.msra.mxu0 0.0
    %1369 = vmatprep.subr.mxu0 0.0
    %1370 = vmatpush1.msra.mxu0 0.0
    %1371 = vmatprep.subr.mxu0 0.0
    %1372 = vmatpush1.msra.mxu0 0.0
    %1373 = vmatprep.subr.mxu0 0.0
    %1374 = vmatpush1.msra.mxu0 0.0
    %1375 = vmatprep.subr.mxu0 0.0
    %1376 = vmatpush1.msra.mxu0 0.0
    %1377 = vmatprep.subr.mxu0 0.0
    %1378 = vmatpush1.msra.mxu0 0.0
    %1379 = vmatprep.subr.mxu0 0.0
    %1380 = vmatpush1.msra.mxu0 0.0
    %1381 = vmatprep.subr.mxu0 0.0
    %1382 = vmatpush1.msra.mxu0 0.0
    %1383 = vmatprep.subr.mxu0 0.0
    %1384 = vmatpush1.msra.mxu0 0.0
    %1385 = vmatprep.subr.mxu0 0.0
    %1386 = vmatpush1.msra.mxu0 0.0
    %1387 = vmatprep.subr.mxu0 0.0
    %1388 = vmatpush1.msra.mxu0 0.0
    %1389 = vmatprep.subr.mxu0 0.0
    %1390 = vmatpush1.msra.mxu0 0.0
    %1391 = vmatprep.subr.mxu0 0.0
    %1392 = vmatpush1.msra.mxu0 0.0
    %1393 = vmatprep.subr.mxu0 0.0
    %1394 = vmatpush1.msra.mxu0 0.0
    %1395 = vmatprep.subr.mxu0 0.0
    %1396 = vmatpush1.msra.mxu0 0.0
    %1397 = vmatprep.subr.mxu0 0.0
    %1398 = vmatpush1.msra.mxu0 0.0
    %1399 = vmatprep.subr.mxu0 0.0
    %1400 = vmatpush1.msra.mxu0 0.0
    %1401 = vmatprep.subr.mxu0 0.0
    %1402 = vmatpush1.msra.mxu0 0.0
    %1403 = vmatprep.subr.mxu0 0.0
    %1404 = vmatpush1.msra.mxu0 0.0
    %1405 = vmatprep.subr.mxu0 0.0
    %1406 = vmatpush1.msra.mxu0 0.0
    %1407 = vmatprep.subr.mxu0 0.0
    %1408 = vmatpush1.msra.mxu0 0.0
    %1409 = vmatprep.subr.mxu0 0.0
    %1410 = vmatpush1.msra.mxu0 0.0
    %1411 = vmatprep.subr.mxu0 0.0
    %1412 = vmatpush1.msra.mxu0 0.0
    %1413 = vmatprep.mubr.f32.mxu0 0.0
    %v1414 = vand.u32 %v849, 4294901760
    %1415 = vmatmul.mubr.f32.gmra.mrb[0].mxu0 %v1414
    %v1416 = vpop.f32.mrb[0].mxu0
    %v1417 = vadd.f32 %v1330, %v1416
    %v1418 = vpop.f32.mrb[0].mxu0
    %1419 = vmatprep.mubr.f32.mxu0 0.0
    %v1420 = vand.u32 %v852, 4294901760
    %1421 = vmatmul.mubr.f32.gmra.mrb[0].mxu0 %v1420
    %v1422 = vpop.f32.mrb[0].mxu0
    %v1423 = vadd.f32 %v1336, %v1422
    %v1424 = vpop.f32.mrb[0].mxu0
    %1425 = vmatprep.mubr.f32.mxu0 0.0
    %v1426 = vand.u32 %v855, 4294901760
    %1427 = vmatmul.mubr.f32.gmra.mrb[0].mxu0 %v1426
    %v1428 = vpop.f32.mrb[0].mxu0
    %v1429 = vadd.f32 %v1342, %v1428
    %v1430 = vpop.f32.mrb[0].mxu0
    %1431 = vdwg.mxu0
    %v1432 = vmax.f32 %v1417, 0.0
    %v1433 = vmax.f32 %v1423, 0.0
    %v1434 = vmax.f32 %v1429, 0.0
    %v1435 = vld [vmem:[%s5] sm:$0xff]
    %v1436 = vld [vmem:[%s5 + $0x8] sm:$0x7]
    %v1437 = vld [vmem:[%s6] sm:$0xff]
    %v1438 = vld [vmem:[%s6 + $0x8] sm:$0x7]
    %1440 = vset.pattern.permute.xlu0 0
    %1441 = vperm.xlu0 %1440, %v1437
    %v1442 = vpop.permute.xlu0 %1441
    %1445 = vset.pattern.permute.xlu0 0
    %1446 = vperm.xlu0 %1445, %v1438
    %v1447 = vpop.permute.xlu0 %1446
    %vm1449 = vcmask 162816
    %v1451 = vsel %vm1449, %v1435, 0
    %v1454 = vsel %vm1449, %v1436, 0
    %vm1456 = vcmask 1043456
    %v1458 = vsel %vm1456, %v1434, 0
    %1460 = vmatprep.subr.mxu0 0.0
    %v1461 = vand.u32 %v1432, 4294901760
    %1462 = vmatpush1.msra.mxu0 %v1461
    %1463 = vmatprep.subr.mxu0 0.0
    %v1464 = vand.u32 %v1433, 4294901760
    %1465 = vmatpush1.msra.mxu0 %v1464
    %1466 = vmatprep.subr.mxu0 0.0
    %v1467 = vand.u32 %v1458, 4294901760
    %1468 = vmatpush1.msra.mxu0 %v1467
    %1469 = vmatprep.subr.mxu0 0.0
    %1470 = vmatpush1.msra.mxu0 0.0
    %1471 = vmatprep.subr.mxu0 0.0
    %1472 = vmatpush1.msra.mxu0 0.0
    %1473 = vmatprep.subr.mxu0 0.0
    %1474 = vmatpush1.msra.mxu0 0.0
    %1475 = vmatprep.subr.mxu0 0.0
    %1476 = vmatpush1.msra.mxu0 0.0
    %1477 = vmatprep.subr.mxu0 0.0
    %1478 = vmatpush1.msra.mxu0 0.0
    %1479 = vmatprep.subr.mxu0 0.0
    %1480 = vmatpush1.msra.mxu0 0.0
    %1481 = vmatprep.subr.mxu0 0.0
    %1482 = vmatpush1.msra.mxu0 0.0
    %1483 = vmatprep.subr.mxu0 0.0
    %1484 = vmatpush1.msra.mxu0 0.0
    %1485 = vmatprep.subr.mxu0 0.0
    %1486 = vmatpush1.msra.mxu0 0.0
    %1487 = vmatprep.subr.mxu0 0.0
    %1488 = vmatpush1.msra.mxu0 0.0
    %1489 = vmatprep.subr.mxu0 0.0
    %1490 = vmatpush1.msra.mxu0 0.0
    %1491 = vmatprep.subr.mxu0 0.0
    %1492 = vmatpush1.msra.mxu0 0.0
    %1493 = vmatprep.subr.mxu0 0.0
    %1494 = vmatpush1.msra.mxu0 0.0
    %1495 = vmatprep.subr.mxu0 0.0
    %1496 = vmatpush1.msra.mxu0 0.0
    %1497 = vmatprep.subr.mxu0 0.0
    %1498 = vmatpush1.msra.mxu0 0.0
    %1499 = vmatprep.subr.mxu0 0.0
    %1500 = vmatpush1.msra.mxu0 0.0
    %1501 = vmatprep.subr.mxu0 0.0
    %1502 = vmatpush1.msra.mxu0 0.0
    %1503 = vmatprep.subr.mxu0 0.0
    %1504 = vmatpush1.msra.mxu0 0.0
    %1505 = vmatprep.subr.mxu0 0.0
    %1506 = vmatpush1.msra.mxu0 0.0
    %1507 = vmatprep.subr.mxu0 0.0
    %1508 = vmatpush1.msra.mxu0 0.0
    %1509 = vmatprep.subr.mxu0 0.0
    %1510 = vmatpush1.msra.mxu0 0.0
    %1511 = vmatprep.subr.mxu0 0.0
    %1512 = vmatpush1.msra.mxu0 0.0
    %1513 = vmatprep.subr.mxu0 0.0
    %1514 = vmatpush1.msra.mxu0 0.0
    %1515 = vmatprep.subr.mxu0 0.0
    %1516 = vmatpush1.msra.mxu0 0.0
    %1517 = vmatprep.subr.mxu0 0.0
    %1518 = vmatpush1.msra.mxu0 0.0
    %1519 = vmatprep.subr.mxu0 0.0
    %1520 = vmatpush1.msra.mxu0 0.0
    %1521 = vmatprep.subr.mxu0 0.0
    %1522 = vmatpush1.msra.mxu0 0.0
    %1523 = vmatprep.subr.mxu0 0.0
    %1524 = vmatpush1.msra.mxu0 0.0
    %1525 = vmatprep.subr.mxu0 0.0
    %1526 = vmatpush1.msra.mxu0 0.0
    %1527 = vmatprep.mubr.f32.mxu0 0.0
    %v1528 = vand.u32 %v1451, 4294901760
    %v1529 = vsub.f32 %v1451, %v1528
    %v1530 = vand.u32 %v1529, 4294901760
    %v1531 = vsub.f32 %v1529, %v1530
    %v1532 = vand.u32 %v1531, 4294901760
    %1533 = vmatmul.mubr.f32.gmra.mrb[0].mxu0 %v1532
    %v1534 = vpop.f32.mrb[0].mxu0
    %v1535 = vadd.f32 %v1442, %v1534
    %v1536 = vpop.f32.mrb[0].mxu0
    %1537 = vmatprep.mubr.f32.mxu0 0.0
    %v1538 = vand.u32 %v1454, 4294901760
    %v1539 = vsub.f32 %v1454, %v1538
    %v1540 = vand.u32 %v1539, 4294901760
    %v1541 = vsub.f32 %v1539, %v1540
    %v1542 = vand.u32 %v1541, 4294901760
    %1543 = vmatmul.mubr.f32.gmra.mrb[0].mxu0 %v1542
    %v1544 = vpop.f32.mrb[0].mxu0
    %v1545 = vadd.f32 %v1447, %v1544
    %v1546 = vpop.f32.mrb[0].mxu0
    %1547 = vdwg.mxu0
    %1548 = vmatprep.subr.mxu0 0.0
    %v1549 = vand.u32 %v1432, 4294901760
    %v1550 = vsub.f32 %v1432, %v1549
    %v1551 = vand.u32 %v1550, 4294901760
    %v1552 = vsub.f32 %v1550, %v1551
    %v1553 = vand.u32 %v1552, 4294901760
    %1554 = vmatpush1.msra.mxu0 %v1553
    %1555 = vmatprep.subr.mxu0 0.0
    %v1556 = vand.u32 %v1433, 4294901760
    %v1557 = vsub.f32 %v1433, %v1556
    %v1558 = vand.u32 %v1557, 4294901760
    %v1559 = vsub.f32 %v1557, %v1558
    %v1560 = vand.u32 %v1559, 4294901760
    %1561 = vmatpush1.msra.mxu0 %v1560
    %1562 = vmatprep.subr.mxu0 0.0
    %v1563 = vand.u32 %v1458, 4294901760
    %v1564 = vsub.f32 %v1458, %v1563
    %v1565 = vand.u32 %v1564, 4294901760
    %v1566 = vsub.f32 %v1564, %v1565
    %v1567 = vand.u32 %v1566, 4294901760
    %1568 = vmatpush1.msra.mxu0 %v1567
    %1569 = vmatprep.subr.mxu0 0.0
    %1570 = vmatpush1.msra.mxu0 0.0
    %1571 = vmatprep.subr.mxu0 0.0
    %1572 = vmatpush1.msra.mxu0 0.0
    %1573 = vmatprep.subr.mxu0 0.0
    %1574 = vmatpush1.msra.mxu0 0.0
    %1575 = vmatprep.subr.mxu0 0.0
    %1576 = vmatpush1.msra.mxu0 0.0
    %1577 = vmatprep.subr.mxu0 0.0
    %1578 = vmatpush1.msra.mxu0 0.0
    %1579 = vmatprep.subr.mxu0 0.0
    %1580 = vmatpush1.msra.mxu0 0.0
    %1581 = vmatprep.subr.mxu0 0.0
    %1582 = vmatpush1.msra.mxu0 0.0
    %1583 = vmatprep.subr.mxu0 0.0
    %1584 = vmatpush1.msra.mxu0 0.0
    %1585 = vmatprep.subr.mxu0 0.0
    %1586 = vmatpush1.msra.mxu0 0.0
    %1587 = vmatprep.subr.mxu0 0.0
    %1588 = vmatpush1.msra.mxu0 0.0
    %1589 = vmatprep.subr.mxu0 0.0
    %1590 = vmatpush1.msra.mxu0 0.0
    %1591 = vmatprep.subr.mxu0 0.0
    %1592 = vmatpush1.msra.mxu0 0.0
    %1593 = vmatprep.subr.mxu0 0.0
    %1594 = vmatpush1.msra.mxu0 0.0
    %1595 = vmatprep.subr.mxu0 0.0
    %1596 = vmatpush1.msra.mxu0 0.0
    %1597 = vmatprep.subr.mxu0 0.0
    %1598 = vmatpush1.msra.mxu0 0.0
    %1599 = vmatprep.subr.mxu0 0.0
    %1600 = vmatpush1.msra.mxu0 0.0
    %1601 = vmatprep.subr.mxu0 0.0
    %1602 = vmatpush1.msra.mxu0 0.0
    %1603 = vmatprep.subr.mxu0 0.0
    %1604 = vmatpush1.msra.mxu0 0.0
    %1605 = vmatprep.subr.mxu0 0.0
    %1606 = vmatpush1.msra.mxu0 0.0
    %1607 = vmatprep.subr.mxu0 0.0
    %1608 = vmatpush1.msra.mxu0 0.0
    %1609 = vmatprep.subr.mxu0 0.0
    %1610 = vmatpush1.msra.mxu0 0.0
    %1611 = vmatprep.subr.mxu0 0.0
    %1612 = vmatpush1.msra.mxu0 0.0
    %1613 = vmatprep.subr.mxu0 0.0
    %1614 = vmatpush1.msra.mxu0 0.0
    %1615 = vmatprep.subr.mxu0 0.0
    %1616 = vmatpush1.msra.mxu0 0.0
    %1617 = vmatprep.subr.mxu0 0.0
    %1618 = vmatpush1.msra.mxu0 0.0
    %1619 = vmatprep.subr.mxu0 0.0
    %1620 = vmatpush1.msra.mxu0 0.0
    %1621 = vmatprep.subr.mxu0 0.0
    %1622 = vmatpush1.msra.mxu0 0.0
    %1623 = vmatprep.subr.mxu0 0.0
    %1624 = vmatpush1.msra.mxu0 0.0
    %1625 = vmatprep.subr.mxu0 0.0
    %1626 = vmatpush1.msra.mxu0 0.0
    %1627 = vmatprep.mubr.f32.mxu0 0.0
    %v1628 = vand.u32 %v1451, 4294901760
    %1629 = vmatmul.mubr.f32.gmra.mrb[0].mxu0 %v1628
    %v1630 = vpop.f32.mrb[0].mxu0
    %v1631 = vadd.f32 %v1535, %v1630
    %v1632 = vpop.f32.mrb[0].mxu0
    %1633 = vmatprep.mubr.f32.mxu0 0.0
    %v1634 = vand.u32 %v1454, 4294901760
    %1635 = vmatmul.mubr.f32.gmra.mrb[0].mxu0 %v1634
    %v1636 = vpop.f32.mrb[0].mxu0
    %v1637 = vadd.f32 %v1545, %v1636
    %v1638 = vpop.f32.mrb[0].mxu0
    %1639 = vdwg.mxu0
    %1640 = vmatprep.subr.mxu0 0.0
    %v1641 = vand.u32 %v1432, 4294901760
    %v1642 = vsub.f32 %v1432, %v1641
    %1643 = vmatpush1.msra.mxu0 %v1642
    %1644 = vmatprep.subr.mxu0 0.0
    %v1645 = vand.u32 %v1433, 4294901760
    %v1646 = vsub.f32 %v1433, %v1645
    %1647 = vmatpush1.msra.mxu0 %v1646
    %1648 = vmatprep.subr.mxu0 0.0
    %v1649 = vand.u32 %v1458, 4294901760
    %v1650 = vsub.f32 %v1458, %v1649
    %1651 = vmatpush1.msra.mxu0 %v1650
    %1652 = vmatprep.subr.mxu0 0.0
    %1653 = vmatpush1.msra.mxu0 0.0
    %1654 = vmatprep.subr.mxu0 0.0
    %1655 = vmatpush1.msra.mxu0 0.0
    %1656 = vmatprep.subr.mxu0 0.0
    %1657 = vmatpush1.msra.mxu0 0.0
    %1658 = vmatprep.subr.mxu0 0.0
    %1659 = vmatpush1.msra.mxu0 0.0
    %1660 = vmatprep.subr.mxu0 0.0
    %1661 = vmatpush1.msra.mxu0 0.0
    %1662 = vmatprep.subr.mxu0 0.0
    %1663 = vmatpush1.msra.mxu0 0.0
    %1664 = vmatprep.subr.mxu0 0.0
    %1665 = vmatpush1.msra.mxu0 0.0
    %1666 = vmatprep.subr.mxu0 0.0
    %1667 = vmatpush1.msra.mxu0 0.0
    %1668 = vmatprep.subr.mxu0 0.0
    %1669 = vmatpush1.msra.mxu0 0.0
    %1670 = vmatprep.subr.mxu0 0.0
    %1671 = vmatpush1.msra.mxu0 0.0
    %1672 = vmatprep.subr.mxu0 0.0
    %1673 = vmatpush1.msra.mxu0 0.0
    %1674 = vmatprep.subr.mxu0 0.0
    %1675 = vmatpush1.msra.mxu0 0.0
    %1676 = vmatprep.subr.mxu0 0.0
    %1677 = vmatpush1.msra.mxu0 0.0
    %1678 = vmatprep.subr.mxu0 0.0
    %1679 = vmatpush1.msra.mxu0 0.0
    %1680 = vmatprep.subr.mxu0 0.0
    %1681 = vmatpush1.msra.mxu0 0.0
    %1682 = vmatprep.subr.mxu0 0.0
    %1683 = vmatpush1.msra.mxu0 0.0
    %1684 = vmatprep.subr.mxu0 0.0
    %1685 = vmatpush1.msra.mxu0 0.0
    %1686 = vmatprep.subr.mxu0 0.0
    %1687 = vmatpush1.msra.mxu0 0.0
    %1688 = vmatprep.subr.mxu0 0.0
    %1689 = vmatpush1.msra.mxu0 0.0
    %1690 = vmatprep.subr.mxu0 0.0
    %1691 = vmatpush1.msra.mxu0 0.0
    %1692 = vmatprep.subr.mxu0 0.0
    %1693 = vmatpush1.msra.mxu0 0.0
    %1694 = vmatprep.subr.mxu0 0.0
    %1695 = vmatpush1.msra.mxu0 0.0
    %1696 = vmatprep.subr.mxu0 0.0
    %1697 = vmatpush1.msra.mxu0 0.0
    %1698 = vmatprep.subr.mxu0 0.0
    %1699 = vmatpush1.msra.mxu0 0.0
    %1700 = vmatprep.subr.mxu0 0.0
    %1701 = vmatpush1.msra.mxu0 0.0
    %1702 = vmatprep.subr.mxu0 0.0
    %1703 = vmatpush1.msra.mxu0 0.0
    %1704 = vmatprep.subr.mxu0 0.0
    %1705 = vmatpush1.msra.mxu0 0.0
    %1706 = vmatprep.subr.mxu0 0.0
    %1707 = vmatpush1.msra.mxu0 0.0
    %1708 = vmatprep.subr.mxu0 0.0
    %1709 = vmatpush1.msra.mxu0 0.0
    %1710 = vmatprep.mubr.f32.mxu0 0.0
    %v1711 = vand.u32 %v1451, 4294901760
    %v1712 = vsub.f32 %v1451, %v1711
    %1713 = vmatmul.mubr.f32.gmra.mrb[0].mxu0 %v1712
    %v1714 = vpop.f32.mrb[0].mxu0
    %v1715 = vadd.f32 %v1631, %v1714
    %v1716 = vpop.f32.mrb[0].mxu0
    %1717 = vmatprep.mubr.f32.mxu0 0.0
    %v1718 = vand.u32 %v1454, 4294901760
    %v1719 = vsub.f32 %v1454, %v1718
    %1720 = vmatmul.mubr.f32.gmra.mrb[0].mxu0 %v1719
    %v1721 = vpop.f32.mrb[0].mxu0
    %v1722 = vadd.f32 %v1637, %v1721
    %v1723 = vpop.f32.mrb[0].mxu0
    %1724 = vdwg.mxu0
    %1725 = vmatprep.subr.mxu0 0.0
    %v1726 = vand.u32 %v1432, 4294901760
    %1727 = vmatpush1.msra.mxu0 %v1726
    %1728 = vmatprep.subr.mxu0 0.0
    %v1729 = vand.u32 %v1433, 4294901760
    %1730 = vmatpush1.msra.mxu0 %v1729
    %1731 = vmatprep.subr.mxu0 0.0
    %v1732 = vand.u32 %v1458, 4294901760
    %1733 = vmatpush1.msra.mxu0 %v1732
    %1734 = vmatprep.subr.mxu0 0.0
    %1735 = vmatpush1.msra.mxu0 0.0
    %1736 = vmatprep.subr.mxu0 0.0
    %1737 = vmatpush1.msra.mxu0 0.0
    %1738 = vmatprep.subr.mxu0 0.0
    %1739 = vmatpush1.msra.mxu0 0.0
    %1740 = vmatprep.subr.mxu0 0.0
    %1741 = vmatpush1.msra.mxu0 0.0
    %1742 = vmatprep.subr.mxu0 0.0
    %1743 = vmatpush1.msra.mxu0 0.0
    %1744 = vmatprep.subr.mxu0 0.0
    %1745 = vmatpush1.msra.mxu0 0.0
    %1746 = vmatprep.subr.mxu0 0.0
    %1747 = vmatpush1.msra.mxu0 0.0
    %1748 = vmatprep.subr.mxu0 0.0
    %1749 = vmatpush1.msra.mxu0 0.0
    %1750 = vmatprep.subr.mxu0 0.0
    %1751 = vmatpush1.msra.mxu0 0.0
    %1752 = vmatprep.subr.mxu0 0.0
    %1753 = vmatpush1.msra.mxu0 0.0
    %1754 = vmatprep.subr.mxu0 0.0
    %1755 = vmatpush1.msra.mxu0 0.0
    %1756 = vmatprep.subr.mxu0 0.0
    %1757 = vmatpush1.msra.mxu0 0.0
    %1758 = vmatprep.subr.mxu0 0.0
    %1759 = vmatpush1.msra.mxu0 0.0
    %1760 = vmatprep.subr.mxu0 0.0
    %1761 = vmatpush1.msra.mxu0 0.0
    %1762 = vmatprep.subr.mxu0 0.0
    %1763 = vmatpush1.msra.mxu0 0.0
    %1764 = vmatprep.subr.mxu0 0.0
    %1765 = vmatpush1.msra.mxu0 0.0
    %1766 = vmatprep.subr.mxu0 0.0
    %1767 = vmatpush1.msra.mxu0 0.0
    %1768 = vmatprep.subr.mxu0 0.0
    %1769 = vmatpush1.msra.mxu0 0.0
    %1770 = vmatprep.subr.mxu0 0.0
    %1771 = vmatpush1.msra.mxu0 0.0
    %1772 = vmatprep.subr.mxu0 0.0
    %1773 = vmatpush1.msra.mxu0 0.0
    %1774 = vmatprep.subr.mxu0 0.0
    %1775 = vmatpush1.msra.mxu0 0.0
    %1776 = vmatprep.subr.mxu0 0.0
    %1777 = vmatpush1.msra.mxu0 0.0
    %1778 = vmatprep.subr.mxu0 0.0
    %1779 = vmatpush1.msra.mxu0 0.0
    %1780 = vmatprep.subr.mxu0 0.0
    %1781 = vmatpush1.msra.mxu0 0.0
    %1782 = vmatprep.subr.mxu0 0.0
    %1783 = vmatpush1.msra.mxu0 0.0
    %1784 = vmatprep.subr.mxu0 0.0
    %1785 = vmatpush1.msra.mxu0 0.0
    %1786 = vmatprep.subr.mxu0 0.0
    %1787 = vmatpush1.msra.mxu0 0.0
    %1788 = vmatprep.subr.mxu0 0.0
    %1789 = vmatpush1.msra.mxu0 0.0
    %1790 = vmatprep.subr.mxu0 0.0
    %1791 = vmatpush1.msra.mxu0 0.0
    %1792 = vmatprep.mubr.f32.mxu0 0.0
    %v1793 = vand.u32 %v1451, 4294901760
    %v1794 = vsub.f32 %v1451, %v1793
    %v1795 = vand.u32 %v1794, 4294901760
    %1796 = vmatmul.mubr.f32.gmra.mrb[0].mxu0 %v1795
    %v1797 = vpop.f32.mrb[0].mxu0
    %v1798 = vadd.f32 %v1715, %v1797
    %v1799 = vpop.f32.mrb[0].mxu0
    %1800 = vmatprep.mubr.f32.mxu0 0.0
    %v1801 = vand.u32 %v1454, 4294901760
    %v1802 = vsub.f32 %v1454, %v1801
    %v1803 = vand.u32 %v1802, 4294901760
    %1804 = vmatmul.mubr.f32.gmra.mrb[0].mxu0 %v1803
    %v1805 = vpop.f32.mrb[0].mxu0
    %v1806 = vadd.f32 %v1722, %v1805
    %v1807 = vpop.f32.mrb[0].mxu0
    %1808 = vdwg.mxu0
    %1809 = vmatprep.subr.mxu0 0.0
    %v1810 = vand.u32 %v1432, 4294901760
    %v1811 = vsub.f32 %v1432, %v1810
    %v1812 = vand.u32 %v1811, 4294901760
    %1813 = vmatpush1.msra.mxu0 %v1812
    %1814 = vmatprep.subr.mxu0 0.0
    %v1815 = vand.u32 %v1433, 4294901760
    %v1816 = vsub.f32 %v1433, %v1815
    %v1817 = vand.u32 %v1816, 4294901760
    %1818 = vmatpush1.msra.mxu0 %v1817
    %1819 = vmatprep.subr.mxu0 0.0
    %v1820 = vand.u32 %v1458, 4294901760
    %v1821 = vsub.f32 %v1458, %v1820
    %v1822 = vand.u32 %v1821, 4294901760
    %1823 = vmatpush1.msra.mxu0 %v1822
    %1824 = vmatprep.subr.mxu0 0.0
    %1825 = vmatpush1.msra.mxu0 0.0
    %1826 = vmatprep.subr.mxu0 0.0
    %1827 = vmatpush1.msra.mxu0 0.0
    %1828 = vmatprep.subr.mxu0 0.0
    %1829 = vmatpush1.msra.mxu0 0.0
    %1830 = vmatprep.subr.mxu0 0.0
    %1831 = vmatpush1.msra.mxu0 0.0
    %1832 = vmatprep.subr.mxu0 0.0
    %1833 = vmatpush1.msra.mxu0 0.0
    %1834 = vmatprep.subr.mxu0 0.0
    %1835 = vmatpush1.msra.mxu0 0.0
    %1836 = vmatprep.subr.mxu0 0.0
    %1837 = vmatpush1.msra.mxu0 0.0
    %1838 = vmatprep.subr.mxu0 0.0
    %1839 = vmatpush1.msra.mxu0 0.0
    %1840 = vmatprep.subr.mxu0 0.0
    %1841 = vmatpush1.msra.mxu0 0.0
    %1842 = vmatprep.subr.mxu0 0.0
    %1843 = vmatpush1.msra.mxu0 0.0
    %1844 = vmatprep.subr.mxu0 0.0
    %1845 = vmatpush1.msra.mxu0 0.0
    %1846 = vmatprep.subr.mxu0 0.0
    %1847 = vmatpush1.msra.mxu0 0.0
    %1848 = vmatprep.subr.mxu0 0.0
    %1849 = vmatpush1.msra.mxu0 0.0
    %1850 = vmatprep.subr.mxu0 0.0
    %1851 = vmatpush1.msra.mxu0 0.0
    %1852 = vmatprep.subr.mxu0 0.0
    %1853 = vmatpush1.msra.mxu0 0.0
    %1854 = vmatprep.subr.mxu0 0.0
    %1855 = vmatpush1.msra.mxu0 0.0
    %1856 = vmatprep.subr.mxu0 0.0
    %1857 = vmatpush1.msra.mxu0 0.0
    %1858 = vmatprep.subr.mxu0 0.0
    %1859 = vmatpush1.msra.mxu0 0.0
    %1860 = vmatprep.subr.mxu0 0.0
    %1861 = vmatpush1.msra.mxu0 0.0
    %1862 = vmatprep.subr.mxu0 0.0
    %1863 = vmatpush1.msra.mxu0 0.0
    %1864 = vmatprep.subr.mxu0 0.0
    %1865 = vmatpush1.msra.mxu0 0.0
    %1866 = vmatprep.subr.mxu0 0.0
    %1867 = vmatpush1.msra.mxu0 0.0
    %1868 = vmatprep.subr.mxu0 0.0
    %1869 = vmatpush1.msra.mxu0 0.0
    %1870 = vmatprep.subr.mxu0 0.0
    %1871 = vmatpush1.msra.mxu0 0.0
    %1872 = vmatprep.subr.mxu0 0.0
    %1873 = vmatpush1.msra.mxu0 0.0
    %1874 = vmatprep.subr.mxu0 0.0
    %1875 = vmatpush1.msra.mxu0 0.0
    %1876 = vmatprep.subr.mxu0 0.0
    %1877 = vmatpush1.msra.mxu0 0.0
    %1878 = vmatprep.subr.mxu0 0.0
    %1879 = vmatpush1.msra.mxu0 0.0
    %1880 = vmatprep.subr.mxu0 0.0
    %1881 = vmatpush1.msra.mxu0 0.0
    %1882 = vmatprep.mubr.f32.mxu0 0.0
    %v1883 = vand.u32 %v1451, 4294901760
    %1884 = vmatmul.mubr.f32.gmra.mrb[0].mxu0 %v1883
    %v1885 = vpop.f32.mrb[0].mxu0
    %v1886 = vadd.f32 %v1798, %v1885
    %v1887 = vpop.f32.mrb[0].mxu0
    %1888 = vmatprep.mubr.f32.mxu0 0.0
    %v1889 = vand.u32 %v1454, 4294901760
    %1890 = vmatmul.mubr.f32.gmra.mrb[0].mxu0 %v1889
    %v1891 = vpop.f32.mrb[0].mxu0
    %v1892 = vadd.f32 %v1806, %v1891
    %v1893 = vpop.f32.mrb[0].mxu0
    %1894 = vdwg.mxu0
    %1895 = vmatprep.subr.mxu0 0.0
    %v1896 = vand.u32 %v1432, 4294901760
    %1897 = vmatpush1.msra.mxu0 %v1896
    %1898 = vmatprep.subr.mxu0 0.0
    %v1899 = vand.u32 %v1433, 4294901760
    %1900 = vmatpush1.msra.mxu0 %v1899
    %1901 = vmatprep.subr.mxu0 0.0
    %v1902 = vand.u32 %v1458, 4294901760
    %1903 = vmatpush1.msra.mxu0 %v1902
    %1904 = vmatprep.subr.mxu0 0.0
    %1905 = vmatpush1.msra.mxu0 0.0
    %1906 = vmatprep.subr.mxu0 0.0
    %1907 = vmatpush1.msra.mxu0 0.0
    %1908 = vmatprep.subr.mxu0 0.0
    %1909 = vmatpush1.msra.mxu0 0.0
    %1910 = vmatprep.subr.mxu0 0.0
    %1911 = vmatpush1.msra.mxu0 0.0
    %1912 = vmatprep.subr.mxu0 0.0
    %1913 = vmatpush1.msra.mxu0 0.0
    %1914 = vmatprep.subr.mxu0 0.0
    %1915 = vmatpush1.msra.mxu0 0.0
    %1916 = vmatprep.subr.mxu0 0.0
    %1917 = vmatpush1.msra.mxu0 0.0
    %1918 = vmatprep.subr.mxu0 0.0
    %1919 = vmatpush1.msra.mxu0 0.0
    %1920 = vmatprep.subr.mxu0 0.0
    %1921 = vmatpush1.msra.mxu0 0.0
    %1922 = vmatprep.subr.mxu0 0.0
    %1923 = vmatpush1.msra.mxu0 0.0
    %1924 = vmatprep.subr.mxu0 0.0
    %1925 = vmatpush1.msra.mxu0 0.0
    %1926 = vmatprep.subr.mxu0 0.0
    %1927 = vmatpush1.msra.mxu0 0.0
    %1928 = vmatprep.subr.mxu0 0.0
    %1929 = vmatpush1.msra.mxu0 0.0
    %1930 = vmatprep.subr.mxu0 0.0
    %1931 = vmatpush1.msra.mxu0 0.0
    %1932 = vmatprep.subr.mxu0 0.0
    %1933 = vmatpush1.msra.mxu0 0.0
    %1934 = vmatprep.subr.mxu0 0.0
    %1935 = vmatpush1.msra.mxu0 0.0
    %1936 = vmatprep.subr.mxu0 0.0
    %1937 = vmatpush1.msra.mxu0 0.0
    %1938 = vmatprep.subr.mxu0 0.0
    %1939 = vmatpush1.msra.mxu0 0.0
    %1940 = vmatprep.subr.mxu0 0.0
    %1941 = vmatpush1.msra.mxu0 0.0
    %1942 = vmatprep.subr.mxu0 0.0
    %1943 = vmatpush1.msra.mxu0 0.0
    %1944 = vmatprep.subr.mxu0 0.0
    %1945 = vmatpush1.msra.mxu0 0.0
    %1946 = vmatprep.subr.mxu0 0.0
    %1947 = vmatpush1.msra.mxu0 0.0
    %1948 = vmatprep.subr.mxu0 0.0
    %1949 = vmatpush1.msra.mxu0 0.0
    %1950 = vmatprep.subr.mxu0 0.0
    %1951 = vmatpush1.msra.mxu0 0.0
    %1952 = vmatprep.subr.mxu0 0.0
    %1953 = vmatpush1.msra.mxu0 0.0
    %1954 = vmatprep.subr.mxu0 0.0
    %1955 = vmatpush1.msra.mxu0 0.0
    %1956 = vmatprep.subr.mxu0 0.0
    %1957 = vmatpush1.msra.mxu0 0.0
    %1958 = vmatprep.subr.mxu0 0.0
    %1959 = vmatpush1.msra.mxu0 0.0
    %1960 = vmatprep.subr.mxu0 0.0
    %1961 = vmatpush1.msra.mxu0 0.0
    %1962 = vmatprep.mubr.f32.mxu0 0.0
    %v1963 = vand.u32 %v1451, 4294901760
    %1964 = vmatmul.mubr.f32.gmra.mrb[0].mxu0 %v1963
    %v1965 = vpop.f32.mrb[0].mxu0
    %v1966 = vadd.f32 %v1886, %v1965
    %v1967 = vpop.f32.mrb[0].mxu0
    %1968 = vmatprep.mubr.f32.mxu0 0.0
    %v1969 = vand.u32 %v1454, 4294901760
    %1970 = vmatmul.mubr.f32.gmra.mrb[0].mxu0 %v1969
    %v1971 = vpop.f32.mrb[0].mxu0
    %v1972 = vadd.f32 %v1892, %v1971
    %v1973 = vpop.f32.mrb[0].mxu0
    %1974 = vdwg.mxu0
    %v1975 = vmax.f32 %v1966, 0.0
    %v1976 = vmax.f32 %v1972, 0.0
    %v1977 = vld [vmem:[%s7] sm:$0x1f]
    %v1978 = vld [vmem:[%s8] sm:$0x1f]
    %1980 = vset.pattern.permute.xlu0 0
    %1981 = vperm.xlu0 %1980, %v1978
    %v1982 = vpop.permute.xlu0 %1981
    %vm1984 = vcmask 89088
    %v1986 = vsel %vm1984, %v1977, 0
    %v1989 = vsel %vm87, %v1976, 0
    %1991 = vmatprep.subr.mxu0 0.0
    %v1992 = vand.u32 %v1975, 4294901760
    %1993 = vmatpush1.msra.mxu0 %v1992
    %1994 = vmatprep.subr.mxu0 0.0
    %v1995 = vand.u32 %v1989, 4294901760
    %1996 = vmatpush1.msra.mxu0 %v1995
    %1997 = vmatprep.subr.mxu0 0.0
    %1998 = vmatpush1.msra.mxu0 0.0
    %1999 = vmatprep.subr.mxu0 0.0
    %2000 = vmatpush1.msra.mxu0 0.0
    %2001 = vmatprep.subr.mxu0 0.0
    %2002 = vmatpush1.msra.mxu0 0.0
    %2003 = vmatprep.subr.mxu0 0.0
    %2004 = vmatpush1.msra.mxu0 0.0
    %2005 = vmatprep.subr.mxu0 0.0
    %2006 = vmatpush1.msra.mxu0 0.0
    %2007 = vmatprep.subr.mxu0 0.0
    %2008 = vmatpush1.msra.mxu0 0.0
    %2009 = vmatprep.subr.mxu0 0.0
    %2010 = vmatpush1.msra.mxu0 0.0
    %2011 = vmatprep.subr.mxu0 0.0
    %2012 = vmatpush1.msra.mxu0 0.0
    %2013 = vmatprep.subr.mxu0 0.0
    %2014 = vmatpush1.msra.mxu0 0.0
    %2015 = vmatprep.subr.mxu0 0.0
    %2016 = vmatpush1.msra.mxu0 0.0
    %2017 = vmatprep.subr.mxu0 0.0
    %2018 = vmatpush1.msra.mxu0 0.0
    %2019 = vmatprep.subr.mxu0 0.0
    %2020 = vmatpush1.msra.mxu0 0.0
    %2021 = vmatprep.subr.mxu0 0.0
    %2022 = vmatpush1.msra.mxu0 0.0
    %2023 = vmatprep.subr.mxu0 0.0
    %2024 = vmatpush1.msra.mxu0 0.0
    %2025 = vmatprep.subr.mxu0 0.0
    %2026 = vmatpush1.msra.mxu0 0.0
    %2027 = vmatprep.subr.mxu0 0.0
    %2028 = vmatpush1.msra.mxu0 0.0
    %2029 = vmatprep.subr.mxu0 0.0
    %2030 = vmatpush1.msra.mxu0 0.0
    %2031 = vmatprep.subr.mxu0 0.0
    %2032 = vmatpush1.msra.mxu0 0.0
    %2033 = vmatprep.subr.mxu0 0.0
    %2034 = vmatpush1.msra.mxu0 0.0
    %2035 = vmatprep.subr.mxu0 0.0
    %2036 = vmatpush1.msra.mxu0 0.0
    %2037 = vmatprep.subr.mxu0 0.0
    %2038 = vmatpush1.msra.mxu0 0.0
    %2039 = vmatprep.subr.mxu0 0.0
    %2040 = vmatpush1.msra.mxu0 0.0
    %2041 = vmatprep.subr.mxu0 0.0
    %2042 = vmatpush1.msra.mxu0 0.0
    %2043 = vmatprep.subr.mxu0 0.0
    %2044 = vmatpush1.msra.mxu0 0.0
    %2045 = vmatprep.subr.mxu0 0.0
    %2046 = vmatpush1.msra.mxu0 0.0
    %2047 = vmatprep.subr.mxu0 0.0
    %2048 = vmatpush1.msra.mxu0 0.0
    %2049 = vmatprep.subr.mxu0 0.0
    %2050 = vmatpush1.msra.mxu0 0.0
    %2051 = vmatprep.subr.mxu0 0.0
    %2052 = vmatpush1.msra.mxu0 0.0
    %2053 = vmatprep.subr.mxu0 0.0
    %2054 = vmatpush1.msra.mxu0 0.0
    %2055 = vmatprep.subr.mxu0 0.0
    %2056 = vmatpush1.msra.mxu0 0.0
    %2057 = vmatprep.mubr.f32.mxu0 0.0
    %v2058 = vand.u32 %v1986, 4294901760
    %v2059 = vsub.f32 %v1986, %v2058
    %v2060 = vand.u32 %v2059, 4294901760
    %v2061 = vsub.f32 %v2059, %v2060
    %v2062 = vand.u32 %v2061, 4294901760
    %2063 = vmatmul.mubr.f32.gmra.mrb[0].mxu0 %v2062
    %v2064 = vpop.f32.mrb[0].mxu0
    %v2065 = vadd.f32 %v1982, %v2064
    %v2066 = vpop.f32.mrb[0].mxu0
    %2067 = vdwg.mxu0
    %2068 = vmatprep.subr.mxu0 0.0
    %v2069 = vand.u32 %v1975, 4294901760
    %v2070 = vsub.f32 %v1975, %v2069
    %v2071 = vand.u32 %v2070, 4294901760
    %v2072 = vsub.f32 %v2070, %v2071
    %v2073 = vand.u32 %v2072, 4294901760
    %2074 = vmatpush1.msra.mxu0 %v2073
    %2075 = vmatprep.subr.mxu0 0.0
    %v2076 = vand.u32 %v1989, 4294901760
    %v2077 = vsub.f32 %v1989, %v2076
    %v2078 = vand.u32 %v2077, 4294901760
    %v2079 = vsub.f32 %v2077, %v2078
    %v2080 = vand.u32 %v2079, 4294901760
    %2081 = vmatpush1.msra.mxu0 %v2080
    %2082 = vmatprep.subr.mxu0 0.0
    %2083 = vmatpush1.msra.mxu0 0.0
    %2084 = vmatprep.subr.mxu0 0.0
    %2085 = vmatpush1.msra.mxu0 0.0
    %2086 = vmatprep.subr.mxu0 0.0
    %2087 = vmatpush1.msra.mxu0 0.0
    %2088 = vmatprep.subr.mxu0 0.0
    %2089 = vmatpush1.msra.mxu0 0.0
    %2090 = vmatprep.subr.mxu0 0.0
    %2091 = vmatpush1.msra.mxu0 0.0
    %2092 = vmatprep.subr.mxu0 0.0
    %2093 = vmatpush1.msra.mxu0 0.0
    %2094 = vmatprep.subr.mxu0 0.0
    %2095 = vmatpush1.msra.mxu0 0.0
    %2096 = vmatprep.subr.mxu0 0.0
    %2097 = vmatpush1.msra.mxu0 0.0
    %2098 = vmatprep.subr.mxu0 0.0
    %2099 = vmatpush1.msra.mxu0 0.0
    %2100 = vmatprep.subr.mxu0 0.0
    %2101 = vmatpush1.msra.mxu0 0.0
    %2102 = vmatprep.subr.mxu0 0.0
    %2103 = vmatpush1.msra.mxu0 0.0
    %2104 = vmatprep.subr.mxu0 0.0
    %2105 = vmatpush1.msra.mxu0 0.0
    %2106 = vmatprep.subr.mxu0 0.0
    %2107 = vmatpush1.msra.mxu0 0.0
    %2108 = vmatprep.subr.mxu0 0.0
    %2109 = vmatpush1.msra.mxu0 0.0
    %2110 = vmatprep.subr.mxu0 0.0
    %2111 = vmatpush1.msra.mxu0 0.0
    %2112 = vmatprep.subr.mxu0 0.0
    %2113 = vmatpush1.msra.mxu0 0.0
    %2114 = vmatprep.subr.mxu0 0.0
    %2115 = vmatpush1.msra.mxu0 0.0
    %2116 = vmatprep.subr.mxu0 0.0
    %2117 = vmatpush1.msra.mxu0 0.0
    %2118 = vmatprep.subr.mxu0 0.0
    %2119 = vmatpush1.msra.mxu0 0.0
    %2120 = vmatprep.subr.mxu0 0.0
    %2121 = vmatpush1.msra.mxu0 0.0
    %2122 = vmatprep.subr.mxu0 0.0
    %2123 = vmatpush1.msra.mxu0 0.0
    %2124 = vmatprep.subr.mxu0 0.0
    %2125 = vmatpush1.msra.mxu0 0.0
    %2126 = vmatprep.subr.mxu0 0.0
    %2127 = vmatpush1.msra.mxu0 0.0
    %2128 = vmatprep.subr.mxu0 0.0
    %2129 = vmatpush1.msra.mxu0 0.0
    %2130 = vmatprep.subr.mxu0 0.0
    %2131 = vmatpush1.msra.mxu0 0.0
    %2132 = vmatprep.subr.mxu0 0.0
    %2133 = vmatpush1.msra.mxu0 0.0
    %2134 = vmatprep.subr.mxu0 0.0
    %2135 = vmatpush1.msra.mxu0 0.0
    %2136 = vmatprep.subr.mxu0 0.0
    %2137 = vmatpush1.msra.mxu0 0.0
    %2138 = vmatprep.subr.mxu0 0.0
    %2139 = vmatpush1.msra.mxu0 0.0
    %2140 = vmatprep.subr.mxu0 0.0
    %2141 = vmatpush1.msra.mxu0 0.0
    %2142 = vmatprep.mubr.f32.mxu0 0.0
    %v2143 = vand.u32 %v1986, 4294901760
    %2144 = vmatmul.mubr.f32.gmra.mrb[0].mxu0 %v2143
    %v2145 = vpop.f32.mrb[0].mxu0
    %v2146 = vadd.f32 %v2065, %v2145
    %v2147 = vpop.f32.mrb[0].mxu0
    %2148 = vdwg.mxu0
    %2149 = vmatprep.subr.mxu0 0.0
    %v2150 = vand.u32 %v1975, 4294901760
    %v2151 = vsub.f32 %v1975, %v2150
    %2152 = vmatpush1.msra.mxu0 %v2151
    %2153 = vmatprep.subr.mxu0 0.0
    %v2154 = vand.u32 %v1989, 4294901760
    %v2155 = vsub.f32 %v1989, %v2154
    %2156 = vmatpush1.msra.mxu0 %v2155
    %2157 = vmatprep.subr.mxu0 0.0
    %2158 = vmatpush1.msra.mxu0 0.0
    %2159 = vmatprep.subr.mxu0 0.0
    %2160 = vmatpush1.msra.mxu0 0.0
    %2161 = vmatprep.subr.mxu0 0.0
    %2162 = vmatpush1.msra.mxu0 0.0
    %2163 = vmatprep.subr.mxu0 0.0
    %2164 = vmatpush1.msra.mxu0 0.0
    %2165 = vmatprep.subr.mxu0 0.0
    %2166 = vmatpush1.msra.mxu0 0.0
    %2167 = vmatprep.subr.mxu0 0.0
    %2168 = vmatpush1.msra.mxu0 0.0
    %2169 = vmatprep.subr.mxu0 0.0
    %2170 = vmatpush1.msra.mxu0 0.0
    %2171 = vmatprep.subr.mxu0 0.0
    %2172 = vmatpush1.msra.mxu0 0.0
    %2173 = vmatprep.subr.mxu0 0.0
    %2174 = vmatpush1.msra.mxu0 0.0
    %2175 = vmatprep.subr.mxu0 0.0
    %2176 = vmatpush1.msra.mxu0 0.0
    %2177 = vmatprep.subr.mxu0 0.0
    %2178 = vmatpush1.msra.mxu0 0.0
    %2179 = vmatprep.subr.mxu0 0.0
    %2180 = vmatpush1.msra.mxu0 0.0
    %2181 = vmatprep.subr.mxu0 0.0
    %2182 = vmatpush1.msra.mxu0 0.0
    %2183 = vmatprep.subr.mxu0 0.0
    %2184 = vmatpush1.msra.mxu0 0.0
    %2185 = vmatprep.subr.mxu0 0.0
    %2186 = vmatpush1.msra.mxu0 0.0
    %2187 = vmatprep.subr.mxu0 0.0
    %2188 = vmatpush1.msra.mxu0 0.0
    %2189 = vmatprep.subr.mxu0 0.0
    %2190 = vmatpush1.msra.mxu0 0.0
    %2191 = vmatprep.subr.mxu0 0.0
    %2192 = vmatpush1.msra.mxu0 0.0
    %2193 = vmatprep.subr.mxu0 0.0
    %2194 = vmatpush1.msra.mxu0 0.0
    %2195 = vmatprep.subr.mxu0 0.0
    %2196 = vmatpush1.msra.mxu0 0.0
    %2197 = vmatprep.subr.mxu0 0.0
    %2198 = vmatpush1.msra.mxu0 0.0
    %2199 = vmatprep.subr.mxu0 0.0
    %2200 = vmatpush1.msra.mxu0 0.0
    %2201 = vmatprep.subr.mxu0 0.0
    %2202 = vmatpush1.msra.mxu0 0.0
    %2203 = vmatprep.subr.mxu0 0.0
    %2204 = vmatpush1.msra.mxu0 0.0
    %2205 = vmatprep.subr.mxu0 0.0
    %2206 = vmatpush1.msra.mxu0 0.0
    %2207 = vmatprep.subr.mxu0 0.0
    %2208 = vmatpush1.msra.mxu0 0.0
    %2209 = vmatprep.subr.mxu0 0.0
    %2210 = vmatpush1.msra.mxu0 0.0
    %2211 = vmatprep.subr.mxu0 0.0
    %2212 = vmatpush1.msra.mxu0 0.0
    %2213 = vmatprep.subr.mxu0 0.0
    %2214 = vmatpush1.msra.mxu0 0.0
    %2215 = vmatprep.subr.mxu0 0.0
    %2216 = vmatpush1.msra.mxu0 0.0
    %2217 = vmatprep.mubr.f32.mxu0 0.0
    %v2218 = vand.u32 %v1986, 4294901760
    %v2219 = vsub.f32 %v1986, %v2218
    %2220 = vmatmul.mubr.f32.gmra.mrb[0].mxu0 %v2219
    %v2221 = vpop.f32.mrb[0].mxu0
    %v2222 = vadd.f32 %v2146, %v2221
    %v2223 = vpop.f32.mrb[0].mxu0
    %2224 = vdwg.mxu0
    %2225 = vmatprep.subr.mxu0 0.0
    %v2226 = vand.u32 %v1975, 4294901760
    %2227 = vmatpush1.msra.mxu0 %v2226
    %2228 = vmatprep.subr.mxu0 0.0
    %v2229 = vand.u32 %v1989, 4294901760
    %2230 = vmatpush1.msra.mxu0 %v2229
    %2231 = vmatprep.subr.mxu0 0.0
    %2232 = vmatpush1.msra.mxu0 0.0
    %2233 = vmatprep.subr.mxu0 0.0
    %2234 = vmatpush1.msra.mxu0 0.0
    %2235 = vmatprep.subr.mxu0 0.0
    %2236 = vmatpush1.msra.mxu0 0.0
    %2237 = vmatprep.subr.mxu0 0.0
    %2238 = vmatpush1.msra.mxu0 0.0
    %2239 = vmatprep.subr.mxu0 0.0
    %2240 = vmatpush1.msra.mxu0 0.0
    %2241 = vmatprep.subr.mxu0 0.0
    %2242 = vmatpush1.msra.mxu0 0.0
    %2243 = vmatprep.subr.mxu0 0.0
    %2244 = vmatpush1.msra.mxu0 0.0
    %2245 = vmatprep.subr.mxu0 0.0
    %2246 = vmatpush1.msra.mxu0 0.0
    %2247 = vmatprep.subr.mxu0 0.0
    %2248 = vmatpush1.msra.mxu0 0.0
    %2249 = vmatprep.subr.mxu0 0.0
    %2250 = vmatpush1.msra.mxu0 0.0
    %2251 = vmatprep.subr.mxu0 0.0
    %2252 = vmatpush1.msra.mxu0 0.0
    %2253 = vmatprep.subr.mxu0 0.0
    %2254 = vmatpush1.msra.mxu0 0.0
    %2255 = vmatprep.subr.mxu0 0.0
    %2256 = vmatpush1.msra.mxu0 0.0
    %2257 = vmatprep.subr.mxu0 0.0
    %2258 = vmatpush1.msra.mxu0 0.0
    %2259 = vmatprep.subr.mxu0 0.0
    %2260 = vmatpush1.msra.mxu0 0.0
    %2261 = vmatprep.subr.mxu0 0.0
    %2262 = vmatpush1.msra.mxu0 0.0
    %2263 = vmatprep.subr.mxu0 0.0
    %2264 = vmatpush1.msra.mxu0 0.0
    %2265 = vmatprep.subr.mxu0 0.0
    %2266 = vmatpush1.msra.mxu0 0.0
    %2267 = vmatprep.subr.mxu0 0.0
    %2268 = vmatpush1.msra.mxu0 0.0
    %2269 = vmatprep.subr.mxu0 0.0
    %2270 = vmatpush1.msra.mxu0 0.0
    %2271 = vmatprep.subr.mxu0 0.0
    %2272 = vmatpush1.msra.mxu0 0.0
    %2273 = vmatprep.subr.mxu0 0.0
    %2274 = vmatpush1.msra.mxu0 0.0
    %2275 = vmatprep.subr.mxu0 0.0
    %2276 = vmatpush1.msra.mxu0 0.0
    %2277 = vmatprep.subr.mxu0 0.0
    %2278 = vmatpush1.msra.mxu0 0.0
    %2279 = vmatprep.subr.mxu0 0.0
    %2280 = vmatpush1.msra.mxu0 0.0
    %2281 = vmatprep.subr.mxu0 0.0
    %2282 = vmatpush1.msra.mxu0 0.0
    %2283 = vmatprep.subr.mxu0 0.0
    %2284 = vmatpush1.msra.mxu0 0.0
    %2285 = vmatprep.subr.mxu0 0.0
    %2286 = vmatpush1.msra.mxu0 0.0
    %2287 = vmatprep.subr.mxu0 0.0
    %2288 = vmatpush1.msra.mxu0 0.0
    %2289 = vmatprep.subr.mxu0 0.0
    %2290 = vmatpush1.msra.mxu0 0.0
    %2291 = vmatprep.mubr.f32.mxu0 0.0
    %v2292 = vand.u32 %v1986, 4294901760
    %v2293 = vsub.f32 %v1986, %v2292
    %v2294 = vand.u32 %v2293, 4294901760
    %2295 = vmatmul.mubr.f32.gmra.mrb[0].mxu0 %v2294
    %v2296 = vpop.f32.mrb[0].mxu0
    %v2297 = vadd.f32 %v2222, %v2296
    %v2298 = vpop.f32.mrb[0].mxu0
    %2299 = vdwg.mxu0
    %2300 = vmatprep.subr.mxu0 0.0
    %v2301 = vand.u32 %v1975, 4294901760
    %v2302 = vsub.f32 %v1975, %v2301
    %v2303 = vand.u32 %v2302, 4294901760
    %2304 = vmatpush1.msra.mxu0 %v2303
    %2305 = vmatprep.subr.mxu0 0.0
    %v2306 = vand.u32 %v1989, 4294901760
    %v2307 = vsub.f32 %v1989, %v2306
    %v2308 = vand.u32 %v2307, 4294901760
    %2309 = vmatpush1.msra.mxu0 %v2308
    %2310 = vmatprep.subr.mxu0 0.0
    %2311 = vmatpush1.msra.mxu0 0.0
    %2312 = vmatprep.subr.mxu0 0.0
    %2313 = vmatpush1.msra.mxu0 0.0
    %2314 = vmatprep.subr.mxu0 0.0
    %2315 = vmatpush1.msra.mxu0 0.0
    %2316 = vmatprep.subr.mxu0 0.0
    %2317 = vmatpush1.msra.mxu0 0.0
    %2318 = vmatprep.subr.mxu0 0.0
    %2319 = vmatpush1.msra.mxu0 0.0
    %2320 = vmatprep.subr.mxu0 0.0
    %2321 = vmatpush1.msra.mxu0 0.0
    %2322 = vmatprep.subr.mxu0 0.0
    %2323 = vmatpush1.msra.mxu0 0.0
    %2324 = vmatprep.subr.mxu0 0.0
    %2325 = vmatpush1.msra.mxu0 0.0
    %2326 = vmatprep.subr.mxu0 0.0
    %2327 = vmatpush1.msra.mxu0 0.0
    %2328 = vmatprep.subr.mxu0 0.0
    %2329 = vmatpush1.msra.mxu0 0.0
    %2330 = vmatprep.subr.mxu0 0.0
    %2331 = vmatpush1.msra.mxu0 0.0
    %2332 = vmatprep.subr.mxu0 0.0
    %2333 = vmatpush1.msra.mxu0 0.0
    %2334 = vmatprep.subr.mxu0 0.0
    %2335 = vmatpush1.msra.mxu0 0.0
    %2336 = vmatprep.subr.mxu0 0.0
    %2337 = vmatpush1.msra.mxu0 0.0
    %2338 = vmatprep.subr.mxu0 0.0
    %2339 = vmatpush1.msra.mxu0 0.0
    %2340 = vmatprep.subr.mxu0 0.0
    %2341 = vmatpush1.msra.mxu0 0.0
    %2342 = vmatprep.subr.mxu0 0.0
    %2343 = vmatpush1.msra.mxu0 0.0
    %2344 = vmatprep.subr.mxu0 0.0
    %2345 = vmatpush1.msra.mxu0 0.0
    %2346 = vmatprep.subr.mxu0 0.0
    %2347 = vmatpush1.msra.mxu0 0.0
    %2348 = vmatprep.subr.mxu0 0.0
    %2349 = vmatpush1.msra.mxu0 0.0
    %2350 = vmatprep.subr.mxu0 0.0
    %2351 = vmatpush1.msra.mxu0 0.0
    %2352 = vmatprep.subr.mxu0 0.0
    %2353 = vmatpush1.msra.mxu0 0.0
    %2354 = vmatprep.subr.mxu0 0.0
    %2355 = vmatpush1.msra.mxu0 0.0
    %2356 = vmatprep.subr.mxu0 0.0
    %2357 = vmatpush1.msra.mxu0 0.0
    %2358 = vmatprep.subr.mxu0 0.0
    %2359 = vmatpush1.msra.mxu0 0.0
    %2360 = vmatprep.subr.mxu0 0.0
    %2361 = vmatpush1.msra.mxu0 0.0
    %2362 = vmatprep.subr.mxu0 0.0
    %2363 = vmatpush1.msra.mxu0 0.0
    %2364 = vmatprep.subr.mxu0 0.0
    %2365 = vmatpush1.msra.mxu0 0.0
    %2366 = vmatprep.subr.mxu0 0.0
    %2367 = vmatpush1.msra.mxu0 0.0
    %2368 = vmatprep.subr.mxu0 0.0
    %2369 = vmatpush1.msra.mxu0 0.0
    %2370 = vmatprep.mubr.f32.mxu0 0.0
    %v2371 = vand.u32 %v1986, 4294901760
    %2372 = vmatmul.mubr.f32.gmra.mrb[0].mxu0 %v2371
    %v2373 = vpop.f32.mrb[0].mxu0
    %v2374 = vadd.f32 %v2297, %v2373
    %v2375 = vpop.f32.mrb[0].mxu0
    %2376 = vdwg.mxu0
    %2377 = vmatprep.subr.mxu0 0.0
    %v2378 = vand.u32 %v1975, 4294901760
    %2379 = vmatpush1.msra.mxu0 %v2378
    %2380 = vmatprep.subr.mxu0 0.0
    %v2381 = vand.u32 %v1989, 4294901760
    %2382 = vmatpush1.msra.mxu0 %v2381
    %2383 = vmatprep.subr.mxu0 0.0
    %2384 = vmatpush1.msra.mxu0 0.0
    %2385 = vmatprep.subr.mxu0 0.0
    %2386 = vmatpush1.msra.mxu0 0.0
    %2387 = vmatprep.subr.mxu0 0.0
    %2388 = vmatpush1.msra.mxu0 0.0
    %2389 = vmatprep.subr.mxu0 0.0
    %2390 = vmatpush1.msra.mxu0 0.0
    %2391 = vmatprep.subr.mxu0 0.0
    %2392 = vmatpush1.msra.mxu0 0.0
    %2393 = vmatprep.subr.mxu0 0.0
    %2394 = vmatpush1.msra.mxu0 0.0
    %2395 = vmatprep.subr.mxu0 0.0
    %2396 = vmatpush1.msra.mxu0 0.0
    %2397 = vmatprep.subr.mxu0 0.0
    %2398 = vmatpush1.msra.mxu0 0.0
    %2399 = vmatprep.subr.mxu0 0.0
    %2400 = vmatpush1.msra.mxu0 0.0
    %2401 = vmatprep.subr.mxu0 0.0
    %2402 = vmatpush1.msra.mxu0 0.0
    %2403 = vmatprep.subr.mxu0 0.0
    %2404 = vmatpush1.msra.mxu0 0.0
    %2405 = vmatprep.subr.mxu0 0.0
    %2406 = vmatpush1.msra.mxu0 0.0
    %2407 = vmatprep.subr.mxu0 0.0
    %2408 = vmatpush1.msra.mxu0 0.0
    %2409 = vmatprep.subr.mxu0 0.0
    %2410 = vmatpush1.msra.mxu0 0.0
    %2411 = vmatprep.subr.mxu0 0.0
    %2412 = vmatpush1.msra.mxu0 0.0
    %2413 = vmatprep.subr.mxu0 0.0
    %2414 = vmatpush1.msra.mxu0 0.0
    %2415 = vmatprep.subr.mxu0 0.0
    %2416 = vmatpush1.msra.mxu0 0.0
    %2417 = vmatprep.subr.mxu0 0.0
    %2418 = vmatpush1.msra.mxu0 0.0
    %2419 = vmatprep.subr.mxu0 0.0
    %2420 = vmatpush1.msra.mxu0 0.0
    %2421 = vmatprep.subr.mxu0 0.0
    %2422 = vmatpush1.msra.mxu0 0.0
    %2423 = vmatprep.subr.mxu0 0.0
    %2424 = vmatpush1.msra.mxu0 0.0
    %2425 = vmatprep.subr.mxu0 0.0
    %2426 = vmatpush1.msra.mxu0 0.0
    %2427 = vmatprep.subr.mxu0 0.0
    %2428 = vmatpush1.msra.mxu0 0.0
    %2429 = vmatprep.subr.mxu0 0.0
    %2430 = vmatpush1.msra.mxu0 0.0
    %2431 = vmatprep.subr.mxu0 0.0
    %2432 = vmatpush1.msra.mxu0 0.0
    %2433 = vmatprep.subr.mxu0 0.0
    %2434 = vmatpush1.msra.mxu0 0.0
    %2435 = vmatprep.subr.mxu0 0.0
    %2436 = vmatpush1.msra.mxu0 0.0
    %2437 = vmatprep.subr.mxu0 0.0
    %2438 = vmatpush1.msra.mxu0 0.0
    %2439 = vmatprep.subr.mxu0 0.0
    %2440 = vmatpush1.msra.mxu0 0.0
    %2441 = vmatprep.subr.mxu0 0.0
    %2442 = vmatpush1.msra.mxu0 0.0
    %2443 = vmatprep.mubr.f32.mxu0 0.0
    %v2444 = vand.u32 %v1986, 4294901760
    %2445 = vmatmul.mubr.f32.gmra.mrb[0].mxu0 %v2444
    %v2446 = vpop.f32.mrb[0].mxu0
    %v2447 = vadd.f32 %v2374, %v2446
    %v2448 = vpop.f32.mrb[0].mxu0
    %2449 = vdwg.mxu0
    %vm2450 = vcmask 61440
    %v2451 = vsel %vm2450, %v2447, -inf
    %v2452 = vrot.slane %v2451, 4
    %v2453 = vmax.f32 %v2451, %v2452
    %v2454 = vrot.slane %v2453, 2
    %v2455 = vmax.f32 %v2453, %v2454
    %v2456 = vrot.slane %v2455, 1
    %v2457 = vmax.f32 %v2455, %v2456
    %v2458 = vsub.f32 %v2447, %v2457
    %v2459 = vmul.f32 %v2458, 1.442695
    %v2460 = vpow.pop %v2459
    %v2461 = vsel %vm2450, %v2460, 0.0
    %v2462 = vrot.slane %v2461, 4
    %v2463 = vadd.f32 %v2461, %v2462
    %v2464 = vrot.slane %v2463, 2
    %v2465 = vadd.f32 %v2463, %v2464
    %v2466 = vrot.slane %v2465, 1
    %v2467 = vadd.f32 %v2465, %v2466
    %v2468 = vrcp.pop %v2467
    %v2469 = vmul.f32 %v2460, %v2468
    %2470 = vst.msk [vmem:[#allocation2] sm:$0x1f] %vm2450, %v2469
    // Predicated region
    $region38: #{tpu_custom_call.1} parent=1 // pred_check
      _
    $region39: #{tpu_custom_call.1} parent=1 // pred_check_branch
      %2472 = sbr.rel (0) target = $region41
    $region40: #{tpu_custom_call.1} parent=1 // pred_region
      %s2474 = ssub.s32 128, 128
      %2475 = vsyncadd [#allocation3], %s2474
      %s2477 = sshll.u32 [#allocation2], 4
      %s2478 = int_to_ptr.vmem [resolvable:$true] %s2477
      %2480 = dma.vmem_to_hbm [thread:$0]  %s2478, 128, %s9, [#allocation3]
    $region41: #{tpu_custom_call.1} parent=1 // pred_fallthru
      _
    // Predicated region
    $region42: #{tpu_custom_call.1} parent=1 // pred_check
      _
    $region43: #{tpu_custom_call.1} parent=1 // pred_check_branch
      %2482 = sbr.rel (0) target = $region45
    $region44: #{tpu_custom_call.1} parent=1 // pred_region
      %2483 = dma.done [#allocation3], 128
    $region45: #{tpu_custom_call.1} parent=1 // pred_fallthru
      _
    %2484 = vsyncpa [#allocation3], 1

</llo_original>
